<compile_context>
chip_gen: v6e
topology: v6e:2x2x1
jax: 0.10.0
libtpu: 0.0.40
codegen_flags: <defaults>
</compile_context>

<pallas_src>
import jax
import jax.numpy as jnp
from jax.experimental import pallas as pl
from jax.experimental.pallas import tpu as pltpu

EPS = 1e-5  # nn.GroupNorm default


def _groupnorm1(x, gamma, beta):
    # GroupNorm(num_groups=1) on (rows, C): per-row mean/var over all channels.
    # Single-pass statistics (mu and E[x^2] together), clamp var at 0.
    mu = jnp.mean(x, axis=-1, keepdims=True)
    ms = jnp.mean(x * x, axis=-1, keepdims=True)
    var = jnp.maximum(ms - mu * mu, 0.0)
    return (x - mu) * jax.lax.rsqrt(var + EPS) * gamma + beta


def attdest_kernel(ctrx_ref, ctry_ref, destx_ref, desty_ref, agts_ref,
                   w1_ref, b1_ref,
                   w2_ref, g2_ref, bt2_ref,
                   w3d_ref, w3a_ref, g3_ref, bt3_ref,
                   out_ref):
    # Block shapes (per grid step = TA agents):
    #   ctrx/ctry : (TA, 1)           dest x/y : (TA, num_mods)
    #   agts      : (TA, n_agt)       out      : (TA, num_mods * n_agt)
    num_mods = destx_ref.shape[1]

    w1 = w1_ref[...]                       # (2, C)
    w1x = w1[0:1, :]                       # (1, C)
    w1y = w1[1:2, :]                       # (1, C)
    b1 = b1_ref[...]                       # (1, C)
    w2 = w2_ref[...]                       # (C, C)
    g2 = g2_ref[...]
    bt2 = bt2_ref[...]
    w3d = w3d_ref[...]                     # (C, C)
    g3 = g3_ref[...]
    bt3 = bt3_ref[...]

    ctr_x = ctrx_ref[...]                  # (TA, 1)
    ctr_y = ctry_ref[...]                  # (TA, 1)
    dest_x = destx_ref[...]                # (TA, num_mods)
    dest_y = desty_ref[...]                # (TA, num_mods)

    # agts branch of the concat-Linear: once per agent, reused over all modes.
    a_proj = jnp.dot(agts_ref[...], w3a_ref[...],
                     preferred_element_type=jnp.float32)   # (TA, C)

    cols = []
    for m in range(num_mods):              # static unroll over modes
        dx = ctr_x - dest_x[:, m:m + 1]    # (TA, 1)
        dy = ctr_y - dest_y[:, m:m + 1]    # (TA, 1)

        # --- self.dist: Linear(2, C) + bias, ReLU --- (VPU FMAs, no MXU)
        h = jnp.maximum(dx * w1x + dy * w1y + b1, 0.0)      # (TA, C)
        # --- Linear(C, C, bias=False) + GroupNorm(1) + ReLU ---
        h = jnp.dot(h, w2, preferred_element_type=jnp.float32)
        h = jnp.maximum(_groupnorm1(h, g2, bt2), 0.0)

        # --- self.agt: Linear(2C, C, bias=False) on cat([h, agts]) ---
        o = jnp.dot(h, w3d, preferred_element_type=jnp.float32) + a_proj
        o = jnp.maximum(_groupnorm1(o, g3, bt3), 0.0)       # (TA, C)
        cols.append(o)

    # Lane-dense store: (TA, num_mods * C).
    out_ref[...] = jnp.concatenate(cols, axis=-1).astype(out_ref.dtype)


def att_dest(agts, agt_ctrs, dest_ctrs, params, *, agents_per_step=256):
    """agts: (N, n_agt), agt_ctrs: (N, 2), dest_ctrs: (N, num_mods, 2)
       returns (N * num_mods, n_agt), matching the PyTorch module."""
    N, n_agt = agts.shape
    num_mods = dest_ctrs.shape[1]

    # Agents per grid step: large tiles (amortize per-step overhead); keep the
    # tile sublane-aligned when it does not span the whole (padded) array.
    TA = min(agents_per_step, N)
    if TA < N:
        TA = ((TA + 7) // 8) * 8
    n_steps = pl.cdiv(N, TA)
    Npad = n_steps * TA

    # PyTorch stores Linear weights as (out, in); transpose to (in, out) so the
    # kernel computes x @ W. Split W3 into the dist-feature and agts halves.
    w1t = params["w1"].T                       # (2, C)
    b1 = params["b1"].reshape(1, n_agt)
    w2t = params["w2"].T                       # (C, C)
    g2 = params["g2"].reshape(1, n_agt)
    bt2 = params["bt2"].reshape(1, n_agt)
    w3d = params["w3"][:, :n_agt].T            # (C, C)
    w3a = params["w3"][:, n_agt:].T            # (C, C)
    g3 = params["g3"].reshape(1, n_agt)
    bt3 = params["bt3"].reshape(1, n_agt)

    # Coordinate split (layout prep only; the subtraction stays in-kernel).
    ctr_x = agt_ctrs[:, 0:1]                   # (N, 1)
    ctr_y = agt_ctrs[:, 1:2]                   # (N, 1)
    dest_x = dest_ctrs[:, :, 0]                # (N, num_mods)
    dest_y = dest_ctrs[:, :, 1]                # (N, num_mods)
    agts2 = agts                               # (N, C)

    if Npad != N:
        p = Npad - N
        ctr_x = jnp.pad(ctr_x, ((0, p), (0, 0)))
        ctr_y = jnp.pad(ctr_y, ((0, p), (0, 0)))
        dest_x = jnp.pad(dest_x, ((0, p), (0, 0)))
        dest_y = jnp.pad(dest_y, ((0, p), (0, 0)))
        agts2 = jnp.pad(agts2, ((0, p), (0, 0)))

    def rowspec(cols):
        return pl.BlockSpec((TA, cols), lambda i: (i, 0))

    def wspec(shape):
        return pl.BlockSpec(shape, lambda i: (0, 0))

    out = pl.pallas_call(
        attdest_kernel,
        out_shape=jax.ShapeDtypeStruct((Npad, num_mods * n_agt), jnp.float32),
        grid_spec=pltpu.PrefetchScalarGridSpec(
            num_scalar_prefetch=0,
            grid=(n_steps,),
            in_specs=[
                rowspec(1),             # ctr_x
                rowspec(1),             # ctr_y
                rowspec(num_mods),      # dest_x
                rowspec(num_mods),      # dest_y
                rowspec(n_agt),         # agts
                wspec((2, n_agt)),      # w1t
                wspec((1, n_agt)),      # b1
                wspec((n_agt, n_agt)),  # w2t
                wspec((1, n_agt)),      # g2
                wspec((1, n_agt)),      # bt2
                wspec((n_agt, n_agt)),  # w3d
                wspec((n_agt, n_agt)),  # w3a
                wspec((1, n_agt)),      # g3
                wspec((1, n_agt)),      # bt3
            ],
            out_specs=pl.BlockSpec((TA, num_mods * n_agt), lambda i: (i, 0)),
        ),
        compiler_params=pltpu.CompilerParams(dimension_semantics=("parallel",)),
    )(ctr_x, ctr_y, dest_x, dest_y, agts2,
      w1t, b1, w2t, g2, bt2, w3d, w3a, g3, bt3)

    # (Npad, num_mods*C) -> (N, num_mods*C) -> (N*num_mods, C): row-major, free.
    return out[:N].reshape(N * num_mods, n_agt)


def ref_att_dest(agts, agt_ctrs, dest_ctrs, params):
    """Pure-JAX reference mirroring the PyTorch forward exactly."""
    N, n_agt = agts.shape
    num_mods = dest_ctrs.shape[1]
    dist = (agt_ctrs[:, None, :] - dest_ctrs).reshape(-1, 2)
    h = jnp.maximum(dist @ params["w1"].T + params["b1"], 0.0)
    h = h @ params["w2"].T
    mu = h.mean(-1, keepdims=True)
    var = ((h - mu) ** 2).mean(-1, keepdims=True)
    h = jnp.maximum((h - mu) / jnp.sqrt(var + EPS) * params["g2"] + params["bt2"], 0.0)
    a = jnp.repeat(agts, num_mods, axis=0)
    x = jnp.concatenate([h, a], axis=1)
    o = x @ params["w3"].T
    mu = o.mean(-1, keepdims=True)
    var = ((o - mu) ** 2).mean(-1, keepdims=True)
    o = jnp.maximum((o - mu) / jnp.sqrt(var + EPS) * params["g3"] + params["bt3"], 0.0)
    return o


if __name__ == "__main__":
    n_agt, num_mods = 32, 8
    key = jax.random.PRNGKey(0)
    ks = jax.random.split(key, 14)

    # Deterministic synthetic parameters (shapes from AttDest.__init__).
    params = {
        "w1": 0.5 * jax.random.normal(ks[0], (n_agt, 2), jnp.float32),
        "b1": 0.1 * jax.random.normal(ks[1], (n_agt,), jnp.float32),
        "w2": jax.random.normal(ks[2], (n_agt, n_agt), jnp.float32) / jnp.sqrt(n_agt),
        "g2": 1.0 + 0.1 * jax.random.normal(ks[3], (n_agt,), jnp.float32),
        "bt2": 0.1 * jax.random.normal(ks[4], (n_agt,), jnp.float32),
        "w3": jax.random.normal(ks[5], (n_agt, 2 * n_agt), jnp.float32) / jnp.sqrt(2 * n_agt),
        "g3": 1.0 + 0.1 * jax.random.normal(ks[6], (n_agt,), jnp.float32),
        "bt3": 0.1 * jax.random.normal(ks[7], (n_agt,), jnp.float32),
    }

    # --- test 1: small N, single grid step (TA == N) ---
    N1 = 4
    agts1 = jax.random.normal(ks[8], (N1, n_agt), jnp.float32)
    agt_ctrs1 = jax.random.normal(ks[9], (N1, 2), jnp.float32)
    dest_ctrs1 = jax.random.normal(ks[10], (N1, num_mods, 2), jnp.float32)

    out1 = jax.block_until_ready(att_dest(agts1, agt_ctrs1, dest_ctrs1, params))
    ref1 = ref_att_dest(agts1, agt_ctrs1, dest_ctrs1, params)
    assert out1.shape == (N1 * num_mods, n_agt)
    err1 = float(jnp.max(jnp.abs(out1 - ref1)))
    assert jnp.allclose(out1, ref1, atol=1e-4, rtol=1e-4), f"max err {err1}"

    # --- test 2: multi-step grid with padding (N not a multiple of the tile) ---
    N2 = 20
    agts2 = jax.random.normal(ks[11], (N2, n_agt), jnp.float32)
    agt_ctrs2 = jax.random.normal(ks[12], (N2, 2), jnp.float32)
    dest_ctrs2 = jax.random.normal(ks[13], (N2, num_mods, 2), jnp.float32)

    out2 = jax.block_until_ready(
        att_dest(agts2, agt_ctrs2, dest_ctrs2, params, agents_per_step=8))
    ref2 = ref_att_dest(agts2, agt_ctrs2, dest_ctrs2, params)
    assert out2.shape == (N2 * num_mods, n_agt)
    err2 = float(jnp.max(jnp.abs(out2 - ref2)))
    assert jnp.allclose(out2, ref2, atol=1e-4, rtol=1e-4), f"max err {err2}"

    print("KERNEL_OK")
</pallas_src>

<mosaic_0001>
module attributes {stable_mosaic.version = 11 : i64} {
  func.func @attdest_kernel(%arg0: i32, %arg1: memref<4x1xf32, #tpu.memory_space<vmem>>, %arg2: memref<4x1xf32, #tpu.memory_space<vmem>>, %arg3: memref<4x8xf32, #tpu.memory_space<vmem>>, %arg4: memref<4x8xf32, #tpu.memory_space<vmem>>, %arg5: memref<4x32xf32, #tpu.memory_space<vmem>>, %arg6: memref<2x32xf32, #tpu.memory_space<vmem>>, %arg7: memref<1x32xf32, #tpu.memory_space<vmem>>, %arg8: memref<32x32xf32, #tpu.memory_space<vmem>>, %arg9: memref<1x32xf32, #tpu.memory_space<vmem>>, %arg10: memref<1x32xf32, #tpu.memory_space<vmem>>, %arg11: memref<32x32xf32, #tpu.memory_space<vmem>>, %arg12: memref<32x32xf32, #tpu.memory_space<vmem>>, %arg13: memref<1x32xf32, #tpu.memory_space<vmem>>, %arg14: memref<1x32xf32, #tpu.memory_space<vmem>>, %arg15: memref<4x256xf32, #tpu.memory_space<vmem>>) attributes {dimension_semantics = [#tpu.dimension_semantics<parallel>], iteration_bounds = array<i64: 1>, scalar_prefetch = 0 : i64, scratch_operands = 0 : i64, tpu.core_type = #tpu.core_type<tc>, window_params = [{transform_indices = @transform_0, window_bounds = array<i64: 4, 1>}, {transform_indices = @transform_1, window_bounds = array<i64: 4, 1>}, {transform_indices = @transform_2, window_bounds = array<i64: 4, 8>}, {transform_indices = @transform_3, window_bounds = array<i64: 4, 8>}, {transform_indices = @transform_4, window_bounds = array<i64: 4, 32>}, {pipeline_mode = #tpu.pipeline_mode<synchronous>, transform_indices = @transform_5, window_bounds = array<i64: 2, 32>}, {pipeline_mode = #tpu.pipeline_mode<synchronous>, transform_indices = @transform_6, window_bounds = array<i64: 1, 32>}, {pipeline_mode = #tpu.pipeline_mode<synchronous>, transform_indices = @transform_7, window_bounds = array<i64: 32, 32>}, {pipeline_mode = #tpu.pipeline_mode<synchronous>, transform_indices = @transform_8, window_bounds = array<i64: 1, 32>}, {pipeline_mode = #tpu.pipeline_mode<synchronous>, transform_indices = @transform_9, window_bounds = array<i64: 1, 32>}, {pipeline_mode = #tpu.pipeline_mode<synchronous>, transform_indices = @transform_10, window_bounds = array<i64: 32, 32>}, {pipeline_mode = #tpu.pipeline_mode<synchronous>, transform_indices = @transform_11, window_bounds = array<i64: 32, 32>}, {pipeline_mode = #tpu.pipeline_mode<synchronous>, transform_indices = @transform_12, window_bounds = array<i64: 1, 32>}, {pipeline_mode = #tpu.pipeline_mode<synchronous>, transform_indices = @transform_13, window_bounds = array<i64: 1, 32>}, {transform_indices = @transform_14, window_bounds = array<i64: 4, 256>}]} {
    %c0 = arith.constant 0 : index
    %c0_0 = arith.constant 0 : index
    %0 = vector.load %arg6[%c0, %c0_0] : memref<2x32xf32, #tpu.memory_space<vmem>>, vector<2x32xf32>
    %1 = vector.extract_strided_slice %0 {offsets = [0, 0], sizes = [1, 32], strides = [1, 1]} : vector<2x32xf32> to vector<1x32xf32>
    %2 = vector.extract_strided_slice %0 {offsets = [1, 0], sizes = [1, 32], strides = [1, 1]} : vector<2x32xf32> to vector<1x32xf32>
    %c0_1 = arith.constant 0 : index
    %c0_2 = arith.constant 0 : index
    %3 = vector.load %arg7[%c0_1, %c0_2] : memref<1x32xf32, #tpu.memory_space<vmem>>, vector<1x32xf32>
    %c0_3 = arith.constant 0 : index
    %c0_4 = arith.constant 0 : index
    %4 = vector.load %arg8[%c0_3, %c0_4] : memref<32x32xf32, #tpu.memory_space<vmem>>, vector<32x32xf32>
    %c0_5 = arith.constant 0 : index
    %c0_6 = arith.constant 0 : index
    %5 = vector.load %arg9[%c0_5, %c0_6] : memref<1x32xf32, #tpu.memory_space<vmem>>, vector<1x32xf32>
    %c0_7 = arith.constant 0 : index
    %c0_8 = arith.constant 0 : index
    %6 = vector.load %arg10[%c0_7, %c0_8] : memref<1x32xf32, #tpu.memory_space<vmem>>, vector<1x32xf32>
    %c0_9 = arith.constant 0 : index
    %c0_10 = arith.constant 0 : index
    %7 = vector.load %arg11[%c0_9, %c0_10] : memref<32x32xf32, #tpu.memory_space<vmem>>, vector<32x32xf32>
    %c0_11 = arith.constant 0 : index
    %c0_12 = arith.constant 0 : index
    %8 = vector.load %arg13[%c0_11, %c0_12] : memref<1x32xf32, #tpu.memory_space<vmem>>, vector<1x32xf32>
    %c0_13 = arith.constant 0 : index
    %c0_14 = arith.constant 0 : index
    %9 = vector.load %arg14[%c0_13, %c0_14] : memref<1x32xf32, #tpu.memory_space<vmem>>, vector<1x32xf32>
    %c0_15 = arith.constant 0 : index
    %c0_16 = arith.constant 0 : index
    %10 = vector.load %arg1[%c0_15, %c0_16] : memref<4x1xf32, #tpu.memory_space<vmem>>, vector<4x1xf32>
    %c0_17 = arith.constant 0 : index
    %c0_18 = arith.constant 0 : index
    %11 = vector.load %arg2[%c0_17, %c0_18] : memref<4x1xf32, #tpu.memory_space<vmem>>, vector<4x1xf32>
    %c0_19 = arith.constant 0 : index
    %c0_20 = arith.constant 0 : index
    %12 = vector.load %arg3[%c0_19, %c0_20] : memref<4x8xf32, #tpu.memory_space<vmem>>, vector<4x8xf32>
    %c0_21 = arith.constant 0 : index
    %c0_22 = arith.constant 0 : index
    %13 = vector.load %arg4[%c0_21, %c0_22] : memref<4x8xf32, #tpu.memory_space<vmem>>, vector<4x8xf32>
    %c0_23 = arith.constant 0 : index
    %c0_24 = arith.constant 0 : index
    %14 = vector.load %arg5[%c0_23, %c0_24] : memref<4x32xf32, #tpu.memory_space<vmem>>, vector<4x32xf32>
    %c0_25 = arith.constant 0 : index
    %c0_26 = arith.constant 0 : index
    %15 = vector.load %arg12[%c0_25, %c0_26] : memref<32x32xf32, #tpu.memory_space<vmem>>, vector<32x32xf32>
    %cst = arith.constant dense<0.000000e+00> : vector<4x32xf32>
    %16 = tpu.matmul %14, %15, %cst {dimension_numbers = #tpu.dot_dimension_numbers<[1], [0], [0], [1], [0, 0, 1, 1], [], []>} : vector<4x32xf32>, vector<32x32xf32>, vector<4x32xf32> -> vector<4x32xf32>
    %17 = vector.extract_strided_slice %12 {offsets = [0, 0], sizes = [4, 1], strides = [1, 1]} : vector<4x8xf32> to vector<4x1xf32>
    %18 = arith.subf %10, %17 : vector<4x1xf32>
    %19 = vector.extract_strided_slice %13 {offsets = [0, 0], sizes = [4, 1], strides = [1, 1]} : vector<4x8xf32> to vector<4x1xf32>
    %20 = arith.subf %11, %19 : vector<4x1xf32>
    %21 = vector.broadcast %18 : vector<4x1xf32> to vector<4x32xf32>
    %22 = vector.broadcast %1 : vector<1x32xf32> to vector<4x32xf32>
    %23 = arith.mulf %21, %22 : vector<4x32xf32>
    %24 = vector.broadcast %20 : vector<4x1xf32> to vector<4x32xf32>
    %25 = vector.broadcast %2 : vector<1x32xf32> to vector<4x32xf32>
    %26 = arith.mulf %24, %25 : vector<4x32xf32>
    %27 = arith.addf %23, %26 : vector<4x32xf32>
    %28 = vector.broadcast %3 : vector<1x32xf32> to vector<4x32xf32>
    %29 = arith.addf %27, %28 : vector<4x32xf32>
    %cst_27 = arith.constant 0.000000e+00 : f32
    %30 = vector.broadcast %cst_27 : f32 to vector<4x32xf32>
    %31 = arith.maximumf %29, %30 : vector<4x32xf32>
    %cst_28 = arith.constant dense<0.000000e+00> : vector<4x32xf32>
    %32 = tpu.matmul %31, %4, %cst_28 {dimension_numbers = #tpu.dot_dimension_numbers<[1], [0], [0], [1], [0, 0, 1, 1], [], []>} : vector<4x32xf32>, vector<32x32xf32>, vector<4x32xf32> -> vector<4x32xf32>
    %cst_29 = arith.constant dense<0.000000e+00> : vector<4xf32>
    %33 = vector.multi_reduction <add>, %32, %cst_29 [1] : vector<4x32xf32> to vector<4xf32>
    %34 = vector.shape_cast %33 : vector<4xf32> to vector<4x1xf32>
    %cst_30 = arith.constant 3.200000e+01 : f32
    %35 = vector.broadcast %cst_30 : f32 to vector<4x1xf32>
    %36 = arith.divf %34, %35 : vector<4x1xf32>
    %37 = arith.mulf %32, %32 : vector<4x32xf32>
    %cst_31 = arith.constant dense<0.000000e+00> : vector<4xf32>
    %38 = vector.multi_reduction <add>, %37, %cst_31 [1] : vector<4x32xf32> to vector<4xf32>
    %39 = vector.shape_cast %38 : vector<4xf32> to vector<4x1xf32>
    %cst_32 = arith.constant 3.200000e+01 : f32
    %40 = vector.broadcast %cst_32 : f32 to vector<4x1xf32>
    %41 = arith.divf %39, %40 : vector<4x1xf32>
    %42 = arith.mulf %36, %36 : vector<4x1xf32>
    %43 = arith.subf %41, %42 : vector<4x1xf32>
    %cst_33 = arith.constant 0.000000e+00 : f32
    %44 = vector.broadcast %cst_33 : f32 to vector<4x1xf32>
    %45 = arith.maximumf %43, %44 : vector<4x1xf32>
    %46 = vector.broadcast %36 : vector<4x1xf32> to vector<4x32xf32>
    %47 = arith.subf %32, %46 : vector<4x32xf32>
    %cst_34 = arith.constant 9.99999974E-6 : f32
    %48 = vector.broadcast %cst_34 : f32 to vector<4x1xf32>
    %49 = arith.addf %45, %48 : vector<4x1xf32>
    %50 = math.rsqrt %49 : vector<4x1xf32>
    %51 = vector.broadcast %50 : vector<4x1xf32> to vector<4x32xf32>
    %52 = arith.mulf %47, %51 : vector<4x32xf32>
    %53 = vector.broadcast %5 : vector<1x32xf32> to vector<4x32xf32>
    %54 = arith.mulf %52, %53 : vector<4x32xf32>
    %55 = vector.broadcast %6 : vector<1x32xf32> to vector<4x32xf32>
    %56 = arith.addf %54, %55 : vector<4x32xf32>
    %cst_35 = arith.constant 0.000000e+00 : f32
    %57 = vector.broadcast %cst_35 : f32 to vector<4x32xf32>
    %58 = arith.maximumf %56, %57 : vector<4x32xf32>
    %cst_36 = arith.constant dense<0.000000e+00> : vector<4x32xf32>
    %59 = tpu.matmul %58, %7, %cst_36 {dimension_numbers = #tpu.dot_dimension_numbers<[1], [0], [0], [1], [0, 0, 1, 1], [], []>} : vector<4x32xf32>, vector<32x32xf32>, vector<4x32xf32> -> vector<4x32xf32>
    %60 = arith.addf %59, %16 : vector<4x32xf32>
    %cst_37 = arith.constant dense<0.000000e+00> : vector<4xf32>
    %61 = vector.multi_reduction <add>, %60, %cst_37 [1] : vector<4x32xf32> to vector<4xf32>
    %62 = vector.shape_cast %61 : vector<4xf32> to vector<4x1xf32>
    %cst_38 = arith.constant 3.200000e+01 : f32
    %63 = vector.broadcast %cst_38 : f32 to vector<4x1xf32>
    %64 = arith.divf %62, %63 : vector<4x1xf32>
    %65 = arith.mulf %60, %60 : vector<4x32xf32>
    %cst_39 = arith.constant dense<0.000000e+00> : vector<4xf32>
    %66 = vector.multi_reduction <add>, %65, %cst_39 [1] : vector<4x32xf32> to vector<4xf32>
    %67 = vector.shape_cast %66 : vector<4xf32> to vector<4x1xf32>
    %cst_40 = arith.constant 3.200000e+01 : f32
    %68 = vector.broadcast %cst_40 : f32 to vector<4x1xf32>
    %69 = arith.divf %67, %68 : vector<4x1xf32>
    %70 = arith.mulf %64, %64 : vector<4x1xf32>
    %71 = arith.subf %69, %70 : vector<4x1xf32>
    %cst_41 = arith.constant 0.000000e+00 : f32
    %72 = vector.broadcast %cst_41 : f32 to vector<4x1xf32>
    %73 = arith.maximumf %71, %72 : vector<4x1xf32>
    %74 = vector.broadcast %64 : vector<4x1xf32> to vector<4x32xf32>
    %75 = arith.subf %60, %74 : vector<4x32xf32>
    %cst_42 = arith.constant 9.99999974E-6 : f32
    %76 = vector.broadcast %cst_42 : f32 to vector<4x1xf32>
    %77 = arith.addf %73, %76 : vector<4x1xf32>
    %78 = math.rsqrt %77 : vector<4x1xf32>
    %79 = vector.broadcast %78 : vector<4x1xf32> to vector<4x32xf32>
    %80 = arith.mulf %75, %79 : vector<4x32xf32>
    %81 = vector.broadcast %8 : vector<1x32xf32> to vector<4x32xf32>
    %82 = arith.mulf %80, %81 : vector<4x32xf32>
    %83 = vector.broadcast %9 : vector<1x32xf32> to vector<4x32xf32>
    %84 = arith.addf %82, %83 : vector<4x32xf32>
    %cst_43 = arith.constant 0.000000e+00 : f32
    %85 = vector.broadcast %cst_43 : f32 to vector<4x32xf32>
    %86 = arith.maximumf %84, %85 : vector<4x32xf32>
    %87 = vector.extract_strided_slice %12 {offsets = [0, 1], sizes = [4, 1], strides = [1, 1]} : vector<4x8xf32> to vector<4x1xf32>
    %88 = arith.subf %10, %87 : vector<4x1xf32>
    %89 = vector.extract_strided_slice %13 {offsets = [0, 1], sizes = [4, 1], strides = [1, 1]} : vector<4x8xf32> to vector<4x1xf32>
    %90 = arith.subf %11, %89 : vector<4x1xf32>
    %91 = vector.broadcast %88 : vector<4x1xf32> to vector<4x32xf32>
    %92 = vector.broadcast %1 : vector<1x32xf32> to vector<4x32xf32>
    %93 = arith.mulf %91, %92 : vector<4x32xf32>
    %94 = vector.broadcast %90 : vector<4x1xf32> to vector<4x32xf32>
    %95 = vector.broadcast %2 : vector<1x32xf32> to vector<4x32xf32>
    %96 = arith.mulf %94, %95 : vector<4x32xf32>
    %97 = arith.addf %93, %96 : vector<4x32xf32>
    %98 = vector.broadcast %3 : vector<1x32xf32> to vector<4x32xf32>
    %99 = arith.addf %97, %98 : vector<4x32xf32>
    %cst_44 = arith.constant 0.000000e+00 : f32
    %100 = vector.broadcast %cst_44 : f32 to vector<4x32xf32>
    %101 = arith.maximumf %99, %100 : vector<4x32xf32>
    %cst_45 = arith.constant dense<0.000000e+00> : vector<4x32xf32>
    %102 = tpu.matmul %101, %4, %cst_45 {dimension_numbers = #tpu.dot_dimension_numbers<[1], [0], [0], [1], [0, 0, 1, 1], [], []>} : vector<4x32xf32>, vector<32x32xf32>, vector<4x32xf32> -> vector<4x32xf32>
    %cst_46 = arith.constant dense<0.000000e+00> : vector<4xf32>
    %103 = vector.multi_reduction <add>, %102, %cst_46 [1] : vector<4x32xf32> to vector<4xf32>
    %104 = vector.shape_cast %103 : vector<4xf32> to vector<4x1xf32>
    %cst_47 = arith.constant 3.200000e+01 : f32
    %105 = vector.broadcast %cst_47 : f32 to vector<4x1xf32>
    %106 = arith.divf %104, %105 : vector<4x1xf32>
    %107 = arith.mulf %102, %102 : vector<4x32xf32>
    %cst_48 = arith.constant dense<0.000000e+00> : vector<4xf32>
    %108 = vector.multi_reduction <add>, %107, %cst_48 [1] : vector<4x32xf32> to vector<4xf32>
    %109 = vector.shape_cast %108 : vector<4xf32> to vector<4x1xf32>
    %cst_49 = arith.constant 3.200000e+01 : f32
    %110 = vector.broadcast %cst_49 : f32 to vector<4x1xf32>
    %111 = arith.divf %109, %110 : vector<4x1xf32>
    %112 = arith.mulf %106, %106 : vector<4x1xf32>
    %113 = arith.subf %111, %112 : vector<4x1xf32>
    %cst_50 = arith.constant 0.000000e+00 : f32
    %114 = vector.broadcast %cst_50 : f32 to vector<4x1xf32>
    %115 = arith.maximumf %113, %114 : vector<4x1xf32>
    %116 = vector.broadcast %106 : vector<4x1xf32> to vector<4x32xf32>
    %117 = arith.subf %102, %116 : vector<4x32xf32>
    %cst_51 = arith.constant 9.99999974E-6 : f32
    %118 = vector.broadcast %cst_51 : f32 to vector<4x1xf32>
    %119 = arith.addf %115, %118 : vector<4x1xf32>
    %120 = math.rsqrt %119 : vector<4x1xf32>
    %121 = vector.broadcast %120 : vector<4x1xf32> to vector<4x32xf32>
    %122 = arith.mulf %117, %121 : vector<4x32xf32>
    %123 = vector.broadcast %5 : vector<1x32xf32> to vector<4x32xf32>
    %124 = arith.mulf %122, %123 : vector<4x32xf32>
    %125 = vector.broadcast %6 : vector<1x32xf32> to vector<4x32xf32>
    %126 = arith.addf %124, %125 : vector<4x32xf32>
    %cst_52 = arith.constant 0.000000e+00 : f32
    %127 = vector.broadcast %cst_52 : f32 to vector<4x32xf32>
    %128 = arith.maximumf %126, %127 : vector<4x32xf32>
    %cst_53 = arith.constant dense<0.000000e+00> : vector<4x32xf32>
    %129 = tpu.matmul %128, %7, %cst_53 {dimension_numbers = #tpu.dot_dimension_numbers<[1], [0], [0], [1], [0, 0, 1, 1], [], []>} : vector<4x32xf32>, vector<32x32xf32>, vector<4x32xf32> -> vector<4x32xf32>
    %130 = arith.addf %129, %16 : vector<4x32xf32>
    %cst_54 = arith.constant dense<0.000000e+00> : vector<4xf32>
    %131 = vector.multi_reduction <add>, %130, %cst_54 [1] : vector<4x32xf32> to vector<4xf32>
    %132 = vector.shape_cast %131 : vector<4xf32> to vector<4x1xf32>
    %cst_55 = arith.constant 3.200000e+01 : f32
    %133 = vector.broadcast %cst_55 : f32 to vector<4x1xf32>
    %134 = arith.divf %132, %133 : vector<4x1xf32>
    %135 = arith.mulf %130, %130 : vector<4x32xf32>
    %cst_56 = arith.constant dense<0.000000e+00> : vector<4xf32>
    %136 = vector.multi_reduction <add>, %135, %cst_56 [1] : vector<4x32xf32> to vector<4xf32>
    %137 = vector.shape_cast %136 : vector<4xf32> to vector<4x1xf32>
    %cst_57 = arith.constant 3.200000e+01 : f32
    %138 = vector.broadcast %cst_57 : f32 to vector<4x1xf32>
    %139 = arith.divf %137, %138 : vector<4x1xf32>
    %140 = arith.mulf %134, %134 : vector<4x1xf32>
    %141 = arith.subf %139, %140 : vector<4x1xf32>
    %cst_58 = arith.constant 0.000000e+00 : f32
    %142 = vector.broadcast %cst_58 : f32 to vector<4x1xf32>
    %143 = arith.maximumf %141, %142 : vector<4x1xf32>
    %144 = vector.broadcast %134 : vector<4x1xf32> to vector<4x32xf32>
    %145 = arith.subf %130, %144 : vector<4x32xf32>
    %cst_59 = arith.constant 9.99999974E-6 : f32
    %146 = vector.broadcast %cst_59 : f32 to vector<4x1xf32>
    %147 = arith.addf %143, %146 : vector<4x1xf32>
    %148 = math.rsqrt %147 : vector<4x1xf32>
    %149 = vector.broadcast %148 : vector<4x1xf32> to vector<4x32xf32>
    %150 = arith.mulf %145, %149 : vector<4x32xf32>
    %151 = vector.broadcast %8 : vector<1x32xf32> to vector<4x32xf32>
    %152 = arith.mulf %150, %151 : vector<4x32xf32>
    %153 = vector.broadcast %9 : vector<1x32xf32> to vector<4x32xf32>
    %154 = arith.addf %152, %153 : vector<4x32xf32>
    %cst_60 = arith.constant 0.000000e+00 : f32
    %155 = vector.broadcast %cst_60 : f32 to vector<4x32xf32>
    %156 = arith.maximumf %154, %155 : vector<4x32xf32>
    %157 = vector.extract_strided_slice %12 {offsets = [0, 2], sizes = [4, 1], strides = [1, 1]} : vector<4x8xf32> to vector<4x1xf32>
    %158 = arith.subf %10, %157 : vector<4x1xf32>
    %159 = vector.extract_strided_slice %13 {offsets = [0, 2], sizes = [4, 1], strides = [1, 1]} : vector<4x8xf32> to vector<4x1xf32>
    %160 = arith.subf %11, %159 : vector<4x1xf32>
    %161 = vector.broadcast %158 : vector<4x1xf32> to vector<4x32xf32>
    %162 = vector.broadcast %1 : vector<1x32xf32> to vector<4x32xf32>
    %163 = arith.mulf %161, %162 : vector<4x32xf32>
    %164 = vector.broadcast %160 : vector<4x1xf32> to vector<4x32xf32>
    %165 = vector.broadcast %2 : vector<1x32xf32> to vector<4x32xf32>
    %166 = arith.mulf %164, %165 : vector<4x32xf32>
    %167 = arith.addf %163, %166 : vector<4x32xf32>
    %168 = vector.broadcast %3 : vector<1x32xf32> to vector<4x32xf32>
    %169 = arith.addf %167, %168 : vector<4x32xf32>
    %cst_61 = arith.constant 0.000000e+00 : f32
    %170 = vector.broadcast %cst_61 : f32 to vector<4x32xf32>
    %171 = arith.maximumf %169, %170 : vector<4x32xf32>
    %cst_62 = arith.constant dense<0.000000e+00> : vector<4x32xf32>
    %172 = tpu.matmul %171, %4, %cst_62 {dimension_numbers = #tpu.dot_dimension_numbers<[1], [0], [0], [1], [0, 0, 1, 1], [], []>} : vector<4x32xf32>, vector<32x32xf32>, vector<4x32xf32> -> vector<4x32xf32>
    %cst_63 = arith.constant dense<0.000000e+00> : vector<4xf32>
    %173 = vector.multi_reduction <add>, %172, %cst_63 [1] : vector<4x32xf32> to vector<4xf32>
    %174 = vector.shape_cast %173 : vector<4xf32> to vector<4x1xf32>
    %cst_64 = arith.constant 3.200000e+01 : f32
    %175 = vector.broadcast %cst_64 : f32 to vector<4x1xf32>
    %176 = arith.divf %174, %175 : vector<4x1xf32>
    %177 = arith.mulf %172, %172 : vector<4x32xf32>
    %cst_65 = arith.constant dense<0.000000e+00> : vector<4xf32>
    %178 = vector.multi_reduction <add>, %177, %cst_65 [1] : vector<4x32xf32> to vector<4xf32>
    %179 = vector.shape_cast %178 : vector<4xf32> to vector<4x1xf32>
    %cst_66 = arith.constant 3.200000e+01 : f32
    %180 = vector.broadcast %cst_66 : f32 to vector<4x1xf32>
    %181 = arith.divf %179, %180 : vector<4x1xf32>
    %182 = arith.mulf %176, %176 : vector<4x1xf32>
    %183 = arith.subf %181, %182 : vector<4x1xf32>
    %cst_67 = arith.constant 0.000000e+00 : f32
    %184 = vector.broadcast %cst_67 : f32 to vector<4x1xf32>
    %185 = arith.maximumf %183, %184 : vector<4x1xf32>
    %186 = vector.broadcast %176 : vector<4x1xf32> to vector<4x32xf32>
    %187 = arith.subf %172, %186 : vector<4x32xf32>
    %cst_68 = arith.constant 9.99999974E-6 : f32
    %188 = vector.broadcast %cst_68 : f32 to vector<4x1xf32>
    %189 = arith.addf %185, %188 : vector<4x1xf32>
    %190 = math.rsqrt %189 : vector<4x1xf32>
    %191 = vector.broadcast %190 : vector<4x1xf32> to vector<4x32xf32>
    %192 = arith.mulf %187, %191 : vector<4x32xf32>
    %193 = vector.broadcast %5 : vector<1x32xf32> to vector<4x32xf32>
    %194 = arith.mulf %192, %193 : vector<4x32xf32>
    %195 = vector.broadcast %6 : vector<1x32xf32> to vector<4x32xf32>
    %196 = arith.addf %194, %195 : vector<4x32xf32>
    %cst_69 = arith.constant 0.000000e+00 : f32
    %197 = vector.broadcast %cst_69 : f32 to vector<4x32xf32>
    %198 = arith.maximumf %196, %197 : vector<4x32xf32>
    %cst_70 = arith.constant dense<0.000000e+00> : vector<4x32xf32>
    %199 = tpu.matmul %198, %7, %cst_70 {dimension_numbers = #tpu.dot_dimension_numbers<[1], [0], [0], [1], [0, 0, 1, 1], [], []>} : vector<4x32xf32>, vector<32x32xf32>, vector<4x32xf32> -> vector<4x32xf32>
    %200 = arith.addf %199, %16 : vector<4x32xf32>
    %cst_71 = arith.constant dense<0.000000e+00> : vector<4xf32>
    %201 = vector.multi_reduction <add>, %200, %cst_71 [1] : vector<4x32xf32> to vector<4xf32>
    %202 = vector.shape_cast %201 : vector<4xf32> to vector<4x1xf32>
    %cst_72 = arith.constant 3.200000e+01 : f32
    %203 = vector.broadcast %cst_72 : f32 to vector<4x1xf32>
    %204 = arith.divf %202, %203 : vector<4x1xf32>
    %205 = arith.mulf %200, %200 : vector<4x32xf32>
    %cst_73 = arith.constant dense<0.000000e+00> : vector<4xf32>
    %206 = vector.multi_reduction <add>, %205, %cst_73 [1] : vector<4x32xf32> to vector<4xf32>
    %207 = vector.shape_cast %206 : vector<4xf32> to vector<4x1xf32>
    %cst_74 = arith.constant 3.200000e+01 : f32
    %208 = vector.broadcast %cst_74 : f32 to vector<4x1xf32>
    %209 = arith.divf %207, %208 : vector<4x1xf32>
    %210 = arith.mulf %204, %204 : vector<4x1xf32>
    %211 = arith.subf %209, %210 : vector<4x1xf32>
    %cst_75 = arith.constant 0.000000e+00 : f32
    %212 = vector.broadcast %cst_75 : f32 to vector<4x1xf32>
    %213 = arith.maximumf %211, %212 : vector<4x1xf32>
    %214 = vector.broadcast %204 : vector<4x1xf32> to vector<4x32xf32>
    %215 = arith.subf %200, %214 : vector<4x32xf32>
    %cst_76 = arith.constant 9.99999974E-6 : f32
    %216 = vector.broadcast %cst_76 : f32 to vector<4x1xf32>
    %217 = arith.addf %213, %216 : vector<4x1xf32>
    %218 = math.rsqrt %217 : vector<4x1xf32>
    %219 = vector.broadcast %218 : vector<4x1xf32> to vector<4x32xf32>
    %220 = arith.mulf %215, %219 : vector<4x32xf32>
    %221 = vector.broadcast %8 : vector<1x32xf32> to vector<4x32xf32>
    %222 = arith.mulf %220, %221 : vector<4x32xf32>
    %223 = vector.broadcast %9 : vector<1x32xf32> to vector<4x32xf32>
    %224 = arith.addf %222, %223 : vector<4x32xf32>
    %cst_77 = arith.constant 0.000000e+00 : f32
    %225 = vector.broadcast %cst_77 : f32 to vector<4x32xf32>
    %226 = arith.maximumf %224, %225 : vector<4x32xf32>
    %227 = vector.extract_strided_slice %12 {offsets = [0, 3], sizes = [4, 1], strides = [1, 1]} : vector<4x8xf32> to vector<4x1xf32>
    %228 = arith.subf %10, %227 : vector<4x1xf32>
    %229 = vector.extract_strided_slice %13 {offsets = [0, 3], sizes = [4, 1], strides = [1, 1]} : vector<4x8xf32> to vector<4x1xf32>
    %230 = arith.subf %11, %229 : vector<4x1xf32>
    %231 = vector.broadcast %228 : vector<4x1xf32> to vector<4x32xf32>
    %232 = vector.broadcast %1 : vector<1x32xf32> to vector<4x32xf32>
    %233 = arith.mulf %231, %232 : vector<4x32xf32>
    %234 = vector.broadcast %230 : vector<4x1xf32> to vector<4x32xf32>
    %235 = vector.broadcast %2 : vector<1x32xf32> to vector<4x32xf32>
    %236 = arith.mulf %234, %235 : vector<4x32xf32>
    %237 = arith.addf %233, %236 : vector<4x32xf32>
    %238 = vector.broadcast %3 : vector<1x32xf32> to vector<4x32xf32>
    %239 = arith.addf %237, %238 : vector<4x32xf32>
    %cst_78 = arith.constant 0.000000e+00 : f32
    %240 = vector.broadcast %cst_78 : f32 to vector<4x32xf32>
    %241 = arith.maximumf %239, %240 : vector<4x32xf32>
    %cst_79 = arith.constant dense<0.000000e+00> : vector<4x32xf32>
    %242 = tpu.matmul %241, %4, %cst_79 {dimension_numbers = #tpu.dot_dimension_numbers<[1], [0], [0], [1], [0, 0, 1, 1], [], []>} : vector<4x32xf32>, vector<32x32xf32>, vector<4x32xf32> -> vector<4x32xf32>
    %cst_80 = arith.constant dense<0.000000e+00> : vector<4xf32>
    %243 = vector.multi_reduction <add>, %242, %cst_80 [1] : vector<4x32xf32> to vector<4xf32>
    %244 = vector.shape_cast %243 : vector<4xf32> to vector<4x1xf32>
    %cst_81 = arith.constant 3.200000e+01 : f32
    %245 = vector.broadcast %cst_81 : f32 to vector<4x1xf32>
    %246 = arith.divf %244, %245 : vector<4x1xf32>
    %247 = arith.mulf %242, %242 : vector<4x32xf32>
    %cst_82 = arith.constant dense<0.000000e+00> : vector<4xf32>
    %248 = vector.multi_reduction <add>, %247, %cst_82 [1] : vector<4x32xf32> to vector<4xf32>
    %249 = vector.shape_cast %248 : vector<4xf32> to vector<4x1xf32>
    %cst_83 = arith.constant 3.200000e+01 : f32
    %250 = vector.broadcast %cst_83 : f32 to vector<4x1xf32>
    %251 = arith.divf %249, %250 : vector<4x1xf32>
    %252 = arith.mulf %246, %246 : vector<4x1xf32>
    %253 = arith.subf %251, %252 : vector<4x1xf32>
    %cst_84 = arith.constant 0.000000e+00 : f32
    %254 = vector.broadcast %cst_84 : f32 to vector<4x1xf32>
    %255 = arith.maximumf %253, %254 : vector<4x1xf32>
    %256 = vector.broadcast %246 : vector<4x1xf32> to vector<4x32xf32>
    %257 = arith.subf %242, %256 : vector<4x32xf32>
    %cst_85 = arith.constant 9.99999974E-6 : f32
    %258 = vector.broadcast %cst_85 : f32 to vector<4x1xf32>
    %259 = arith.addf %255, %258 : vector<4x1xf32>
    %260 = math.rsqrt %259 : vector<4x1xf32>
    %261 = vector.broadcast %260 : vector<4x1xf32> to vector<4x32xf32>
    %262 = arith.mulf %257, %261 : vector<4x32xf32>
    %263 = vector.broadcast %5 : vector<1x32xf32> to vector<4x32xf32>
    %264 = arith.mulf %262, %263 : vector<4x32xf32>
    %265 = vector.broadcast %6 : vector<1x32xf32> to vector<4x32xf32>
    %266 = arith.addf %264, %265 : vector<4x32xf32>
    %cst_86 = arith.constant 0.000000e+00 : f32
    %267 = vector.broadcast %cst_86 : f32 to vector<4x32xf32>
    %268 = arith.maximumf %266, %267 : vector<4x32xf32>
    %cst_87 = arith.constant dense<0.000000e+00> : vector<4x32xf32>
    %269 = tpu.matmul %268, %7, %cst_87 {dimension_numbers = #tpu.dot_dimension_numbers<[1], [0], [0], [1], [0, 0, 1, 1], [], []>} : vector<4x32xf32>, vector<32x32xf32>, vector<4x32xf32> -> vector<4x32xf32>
    %270 = arith.addf %269, %16 : vector<4x32xf32>
    %cst_88 = arith.constant dense<0.000000e+00> : vector<4xf32>
    %271 = vector.multi_reduction <add>, %270, %cst_88 [1] : vector<4x32xf32> to vector<4xf32>
    %272 = vector.shape_cast %271 : vector<4xf32> to vector<4x1xf32>
    %cst_89 = arith.constant 3.200000e+01 : f32
    %273 = vector.broadcast %cst_89 : f32 to vector<4x1xf32>
    %274 = arith.divf %272, %273 : vector<4x1xf32>
    %275 = arith.mulf %270, %270 : vector<4x32xf32>
    %cst_90 = arith.constant dense<0.000000e+00> : vector<4xf32>
    %276 = vector.multi_reduction <add>, %275, %cst_90 [1] : vector<4x32xf32> to vector<4xf32>
    %277 = vector.shape_cast %276 : vector<4xf32> to vector<4x1xf32>
    %cst_91 = arith.constant 3.200000e+01 : f32
    %278 = vector.broadcast %cst_91 : f32 to vector<4x1xf32>
    %279 = arith.divf %277, %278 : vector<4x1xf32>
    %280 = arith.mulf %274, %274 : vector<4x1xf32>
    %281 = arith.subf %279, %280 : vector<4x1xf32>
    %cst_92 = arith.constant 0.000000e+00 : f32
    %282 = vector.broadcast %cst_92 : f32 to vector<4x1xf32>
    %283 = arith.maximumf %281, %282 : vector<4x1xf32>
    %284 = vector.broadcast %274 : vector<4x1xf32> to vector<4x32xf32>
    %285 = arith.subf %270, %284 : vector<4x32xf32>
    %cst_93 = arith.constant 9.99999974E-6 : f32
    %286 = vector.broadcast %cst_93 : f32 to vector<4x1xf32>
    %287 = arith.addf %283, %286 : vector<4x1xf32>
    %288 = math.rsqrt %287 : vector<4x1xf32>
    %289 = vector.broadcast %288 : vector<4x1xf32> to vector<4x32xf32>
    %290 = arith.mulf %285, %289 : vector<4x32xf32>
    %291 = vector.broadcast %8 : vector<1x32xf32> to vector<4x32xf32>
    %292 = arith.mulf %290, %291 : vector<4x32xf32>
    %293 = vector.broadcast %9 : vector<1x32xf32> to vector<4x32xf32>
    %294 = arith.addf %292, %293 : vector<4x32xf32>
    %cst_94 = arith.constant 0.000000e+00 : f32
    %295 = vector.broadcast %cst_94 : f32 to vector<4x32xf32>
    %296 = arith.maximumf %294, %295 : vector<4x32xf32>
    %297 = vector.extract_strided_slice %12 {offsets = [0, 4], sizes = [4, 1], strides = [1, 1]} : vector<4x8xf32> to vector<4x1xf32>
    %298 = arith.subf %10, %297 : vector<4x1xf32>
    %299 = vector.extract_strided_slice %13 {offsets = [0, 4], sizes = [4, 1], strides = [1, 1]} : vector<4x8xf32> to vector<4x1xf32>
    %300 = arith.subf %11, %299 : vector<4x1xf32>
    %301 = vector.broadcast %298 : vector<4x1xf32> to vector<4x32xf32>
    %302 = vector.broadcast %1 : vector<1x32xf32> to vector<4x32xf32>
    %303 = arith.mulf %301, %302 : vector<4x32xf32>
    %304 = vector.broadcast %300 : vector<4x1xf32> to vector<4x32xf32>
    %305 = vector.broadcast %2 : vector<1x32xf32> to vector<4x32xf32>
    %306 = arith.mulf %304, %305 : vector<4x32xf32>
    %307 = arith.addf %303, %306 : vector<4x32xf32>
    %308 = vector.broadcast %3 : vector<1x32xf32> to vector<4x32xf32>
    %309 = arith.addf %307, %308 : vector<4x32xf32>
    %cst_95 = arith.constant 0.000000e+00 : f32
    %310 = vector.broadcast %cst_95 : f32 to vector<4x32xf32>
    %311 = arith.maximumf %309, %310 : vector<4x32xf32>
    %cst_96 = arith.constant dense<0.000000e+00> : vector<4x32xf32>
    %312 = tpu.matmul %311, %4, %cst_96 {dimension_numbers = #tpu.dot_dimension_numbers<[1], [0], [0], [1], [0, 0, 1, 1], [], []>} : vector<4x32xf32>, vector<32x32xf32>, vector<4x32xf32> -> vector<4x32xf32>
    %cst_97 = arith.constant dense<0.000000e+00> : vector<4xf32>
    %313 = vector.multi_reduction <add>, %312, %cst_97 [1] : vector<4x32xf32> to vector<4xf32>
    %314 = vector.shape_cast %313 : vector<4xf32> to vector<4x1xf32>
    %cst_98 = arith.constant 3.200000e+01 : f32
    %315 = vector.broadcast %cst_98 : f32 to vector<4x1xf32>
    %316 = arith.divf %314, %315 : vector<4x1xf32>
    %317 = arith.mulf %312, %312 : vector<4x32xf32>
    %cst_99 = arith.constant dense<0.000000e+00> : vector<4xf32>
    %318 = vector.multi_reduction <add>, %317, %cst_99 [1] : vector<4x32xf32> to vector<4xf32>
    %319 = vector.shape_cast %318 : vector<4xf32> to vector<4x1xf32>
    %cst_100 = arith.constant 3.200000e+01 : f32
    %320 = vector.broadcast %cst_100 : f32 to vector<4x1xf32>
    %321 = arith.divf %319, %320 : vector<4x1xf32>
    %322 = arith.mulf %316, %316 : vector<4x1xf32>
    %323 = arith.subf %321, %322 : vector<4x1xf32>
    %cst_101 = arith.constant 0.000000e+00 : f32
    %324 = vector.broadcast %cst_101 : f32 to vector<4x1xf32>
    %325 = arith.maximumf %323, %324 : vector<4x1xf32>
    %326 = vector.broadcast %316 : vector<4x1xf32> to vector<4x32xf32>
    %327 = arith.subf %312, %326 : vector<4x32xf32>
    %cst_102 = arith.constant 9.99999974E-6 : f32
    %328 = vector.broadcast %cst_102 : f32 to vector<4x1xf32>
    %329 = arith.addf %325, %328 : vector<4x1xf32>
    %330 = math.rsqrt %329 : vector<4x1xf32>
    %331 = vector.broadcast %330 : vector<4x1xf32> to vector<4x32xf32>
    %332 = arith.mulf %327, %331 : vector<4x32xf32>
    %333 = vector.broadcast %5 : vector<1x32xf32> to vector<4x32xf32>
    %334 = arith.mulf %332, %333 : vector<4x32xf32>
    %335 = vector.broadcast %6 : vector<1x32xf32> to vector<4x32xf32>
    %336 = arith.addf %334, %335 : vector<4x32xf32>
    %cst_103 = arith.constant 0.000000e+00 : f32
    %337 = vector.broadcast %cst_103 : f32 to vector<4x32xf32>
    %338 = arith.maximumf %336, %337 : vector<4x32xf32>
    %cst_104 = arith.constant dense<0.000000e+00> : vector<4x32xf32>
    %339 = tpu.matmul %338, %7, %cst_104 {dimension_numbers = #tpu.dot_dimension_numbers<[1], [0], [0], [1], [0, 0, 1, 1], [], []>} : vector<4x32xf32>, vector<32x32xf32>, vector<4x32xf32> -> vector<4x32xf32>
    %340 = arith.addf %339, %16 : vector<4x32xf32>
    %cst_105 = arith.constant dense<0.000000e+00> : vector<4xf32>
    %341 = vector.multi_reduction <add>, %340, %cst_105 [1] : vector<4x32xf32> to vector<4xf32>
    %342 = vector.shape_cast %341 : vector<4xf32> to vector<4x1xf32>
    %cst_106 = arith.constant 3.200000e+01 : f32
    %343 = vector.broadcast %cst_106 : f32 to vector<4x1xf32>
    %344 = arith.divf %342, %343 : vector<4x1xf32>
    %345 = arith.mulf %340, %340 : vector<4x32xf32>
    %cst_107 = arith.constant dense<0.000000e+00> : vector<4xf32>
    %346 = vector.multi_reduction <add>, %345, %cst_107 [1] : vector<4x32xf32> to vector<4xf32>
    %347 = vector.shape_cast %346 : vector<4xf32> to vector<4x1xf32>
    %cst_108 = arith.constant 3.200000e+01 : f32
    %348 = vector.broadcast %cst_108 : f32 to vector<4x1xf32>
    %349 = arith.divf %347, %348 : vector<4x1xf32>
    %350 = arith.mulf %344, %344 : vector<4x1xf32>
    %351 = arith.subf %349, %350 : vector<4x1xf32>
    %cst_109 = arith.constant 0.000000e+00 : f32
    %352 = vector.broadcast %cst_109 : f32 to vector<4x1xf32>
    %353 = arith.maximumf %351, %352 : vector<4x1xf32>
    %354 = vector.broadcast %344 : vector<4x1xf32> to vector<4x32xf32>
    %355 = arith.subf %340, %354 : vector<4x32xf32>
    %cst_110 = arith.constant 9.99999974E-6 : f32
    %356 = vector.broadcast %cst_110 : f32 to vector<4x1xf32>
    %357 = arith.addf %353, %356 : vector<4x1xf32>
    %358 = math.rsqrt %357 : vector<4x1xf32>
    %359 = vector.broadcast %358 : vector<4x1xf32> to vector<4x32xf32>
    %360 = arith.mulf %355, %359 : vector<4x32xf32>
    %361 = vector.broadcast %8 : vector<1x32xf32> to vector<4x32xf32>
    %362 = arith.mulf %360, %361 : vector<4x32xf32>
    %363 = vector.broadcast %9 : vector<1x32xf32> to vector<4x32xf32>
    %364 = arith.addf %362, %363 : vector<4x32xf32>
    %cst_111 = arith.constant 0.000000e+00 : f32
    %365 = vector.broadcast %cst_111 : f32 to vector<4x32xf32>
    %366 = arith.maximumf %364, %365 : vector<4x32xf32>
    %367 = vector.extract_strided_slice %12 {offsets = [0, 5], sizes = [4, 1], strides = [1, 1]} : vector<4x8xf32> to vector<4x1xf32>
    %368 = arith.subf %10, %367 : vector<4x1xf32>
    %369 = vector.extract_strided_slice %13 {offsets = [0, 5], sizes = [4, 1], strides = [1, 1]} : vector<4x8xf32> to vector<4x1xf32>
    %370 = arith.subf %11, %369 : vector<4x1xf32>
    %371 = vector.broadcast %368 : vector<4x1xf32> to vector<4x32xf32>
    %372 = vector.broadcast %1 : vector<1x32xf32> to vector<4x32xf32>
    %373 = arith.mulf %371, %372 : vector<4x32xf32>
    %374 = vector.broadcast %370 : vector<4x1xf32> to vector<4x32xf32>
    %375 = vector.broadcast %2 : vector<1x32xf32> to vector<4x32xf32>
    %376 = arith.mulf %374, %375 : vector<4x32xf32>
    %377 = arith.addf %373, %376 : vector<4x32xf32>
    %378 = vector.broadcast %3 : vector<1x32xf32> to vector<4x32xf32>
    %379 = arith.addf %377, %378 : vector<4x32xf32>
    %cst_112 = arith.constant 0.000000e+00 : f32
    %380 = vector.broadcast %cst_112 : f32 to vector<4x32xf32>
    %381 = arith.maximumf %379, %380 : vector<4x32xf32>
    %cst_113 = arith.constant dense<0.000000e+00> : vector<4x32xf32>
    %382 = tpu.matmul %381, %4, %cst_113 {dimension_numbers = #tpu.dot_dimension_numbers<[1], [0], [0], [1], [0, 0, 1, 1], [], []>} : vector<4x32xf32>, vector<32x32xf32>, vector<4x32xf32> -> vector<4x32xf32>
    %cst_114 = arith.constant dense<0.000000e+00> : vector<4xf32>
    %383 = vector.multi_reduction <add>, %382, %cst_114 [1] : vector<4x32xf32> to vector<4xf32>
    %384 = vector.shape_cast %383 : vector<4xf32> to vector<4x1xf32>
    %cst_115 = arith.constant 3.200000e+01 : f32
    %385 = vector.broadcast %cst_115 : f32 to vector<4x1xf32>
    %386 = arith.divf %384, %385 : vector<4x1xf32>
    %387 = arith.mulf %382, %382 : vector<4x32xf32>
    %cst_116 = arith.constant dense<0.000000e+00> : vector<4xf32>
    %388 = vector.multi_reduction <add>, %387, %cst_116 [1] : vector<4x32xf32> to vector<4xf32>
    %389 = vector.shape_cast %388 : vector<4xf32> to vector<4x1xf32>
    %cst_117 = arith.constant 3.200000e+01 : f32
    %390 = vector.broadcast %cst_117 : f32 to vector<4x1xf32>
    %391 = arith.divf %389, %390 : vector<4x1xf32>
    %392 = arith.mulf %386, %386 : vector<4x1xf32>
    %393 = arith.subf %391, %392 : vector<4x1xf32>
    %cst_118 = arith.constant 0.000000e+00 : f32
    %394 = vector.broadcast %cst_118 : f32 to vector<4x1xf32>
    %395 = arith.maximumf %393, %394 : vector<4x1xf32>
    %396 = vector.broadcast %386 : vector<4x1xf32> to vector<4x32xf32>
    %397 = arith.subf %382, %396 : vector<4x32xf32>
    %cst_119 = arith.constant 9.99999974E-6 : f32
    %398 = vector.broadcast %cst_119 : f32 to vector<4x1xf32>
    %399 = arith.addf %395, %398 : vector<4x1xf32>
    %400 = math.rsqrt %399 : vector<4x1xf32>
    %401 = vector.broadcast %400 : vector<4x1xf32> to vector<4x32xf32>
    %402 = arith.mulf %397, %401 : vector<4x32xf32>
    %403 = vector.broadcast %5 : vector<1x32xf32> to vector<4x32xf32>
    %404 = arith.mulf %402, %403 : vector<4x32xf32>
    %405 = vector.broadcast %6 : vector<1x32xf32> to vector<4x32xf32>
    %406 = arith.addf %404, %405 : vector<4x32xf32>
    %cst_120 = arith.constant 0.000000e+00 : f32
    %407 = vector.broadcast %cst_120 : f32 to vector<4x32xf32>
    %408 = arith.maximumf %406, %407 : vector<4x32xf32>
    %cst_121 = arith.constant dense<0.000000e+00> : vector<4x32xf32>
    %409 = tpu.matmul %408, %7, %cst_121 {dimension_numbers = #tpu.dot_dimension_numbers<[1], [0], [0], [1], [0, 0, 1, 1], [], []>} : vector<4x32xf32>, vector<32x32xf32>, vector<4x32xf32> -> vector<4x32xf32>
    %410 = arith.addf %409, %16 : vector<4x32xf32>
    %cst_122 = arith.constant dense<0.000000e+00> : vector<4xf32>
    %411 = vector.multi_reduction <add>, %410, %cst_122 [1] : vector<4x32xf32> to vector<4xf32>
    %412 = vector.shape_cast %411 : vector<4xf32> to vector<4x1xf32>
    %cst_123 = arith.constant 3.200000e+01 : f32
    %413 = vector.broadcast %cst_123 : f32 to vector<4x1xf32>
    %414 = arith.divf %412, %413 : vector<4x1xf32>
    %415 = arith.mulf %410, %410 : vector<4x32xf32>
    %cst_124 = arith.constant dense<0.000000e+00> : vector<4xf32>
    %416 = vector.multi_reduction <add>, %415, %cst_124 [1] : vector<4x32xf32> to vector<4xf32>
    %417 = vector.shape_cast %416 : vector<4xf32> to vector<4x1xf32>
    %cst_125 = arith.constant 3.200000e+01 : f32
    %418 = vector.broadcast %cst_125 : f32 to vector<4x1xf32>
    %419 = arith.divf %417, %418 : vector<4x1xf32>
    %420 = arith.mulf %414, %414 : vector<4x1xf32>
    %421 = arith.subf %419, %420 : vector<4x1xf32>
    %cst_126 = arith.constant 0.000000e+00 : f32
    %422 = vector.broadcast %cst_126 : f32 to vector<4x1xf32>
    %423 = arith.maximumf %421, %422 : vector<4x1xf32>
    %424 = vector.broadcast %414 : vector<4x1xf32> to vector<4x32xf32>
    %425 = arith.subf %410, %424 : vector<4x32xf32>
    %cst_127 = arith.constant 9.99999974E-6 : f32
    %426 = vector.broadcast %cst_127 : f32 to vector<4x1xf32>
    %427 = arith.addf %423, %426 : vector<4x1xf32>
    %428 = math.rsqrt %427 : vector<4x1xf32>
    %429 = vector.broadcast %428 : vector<4x1xf32> to vector<4x32xf32>
    %430 = arith.mulf %425, %429 : vector<4x32xf32>
    %431 = vector.broadcast %8 : vector<1x32xf32> to vector<4x32xf32>
    %432 = arith.mulf %430, %431 : vector<4x32xf32>
    %433 = vector.broadcast %9 : vector<1x32xf32> to vector<4x32xf32>
    %434 = arith.addf %432, %433 : vector<4x32xf32>
    %cst_128 = arith.constant 0.000000e+00 : f32
    %435 = vector.broadcast %cst_128 : f32 to vector<4x32xf32>
    %436 = arith.maximumf %434, %435 : vector<4x32xf32>
    %437 = vector.extract_strided_slice %12 {offsets = [0, 6], sizes = [4, 1], strides = [1, 1]} : vector<4x8xf32> to vector<4x1xf32>
    %438 = arith.subf %10, %437 : vector<4x1xf32>
    %439 = vector.extract_strided_slice %13 {offsets = [0, 6], sizes = [4, 1], strides = [1, 1]} : vector<4x8xf32> to vector<4x1xf32>
    %440 = arith.subf %11, %439 : vector<4x1xf32>
    %441 = vector.broadcast %438 : vector<4x1xf32> to vector<4x32xf32>
    %442 = vector.broadcast %1 : vector<1x32xf32> to vector<4x32xf32>
    %443 = arith.mulf %441, %442 : vector<4x32xf32>
    %444 = vector.broadcast %440 : vector<4x1xf32> to vector<4x32xf32>
    %445 = vector.broadcast %2 : vector<1x32xf32> to vector<4x32xf32>
    %446 = arith.mulf %444, %445 : vector<4x32xf32>
    %447 = arith.addf %443, %446 : vector<4x32xf32>
    %448 = vector.broadcast %3 : vector<1x32xf32> to vector<4x32xf32>
    %449 = arith.addf %447, %448 : vector<4x32xf32>
    %cst_129 = arith.constant 0.000000e+00 : f32
    %450 = vector.broadcast %cst_129 : f32 to vector<4x32xf32>
    %451 = arith.maximumf %449, %450 : vector<4x32xf32>
    %cst_130 = arith.constant dense<0.000000e+00> : vector<4x32xf32>
    %452 = tpu.matmul %451, %4, %cst_130 {dimension_numbers = #tpu.dot_dimension_numbers<[1], [0], [0], [1], [0, 0, 1, 1], [], []>} : vector<4x32xf32>, vector<32x32xf32>, vector<4x32xf32> -> vector<4x32xf32>
    %cst_131 = arith.constant dense<0.000000e+00> : vector<4xf32>
    %453 = vector.multi_reduction <add>, %452, %cst_131 [1] : vector<4x32xf32> to vector<4xf32>
    %454 = vector.shape_cast %453 : vector<4xf32> to vector<4x1xf32>
    %cst_132 = arith.constant 3.200000e+01 : f32
    %455 = vector.broadcast %cst_132 : f32 to vector<4x1xf32>
    %456 = arith.divf %454, %455 : vector<4x1xf32>
    %457 = arith.mulf %452, %452 : vector<4x32xf32>
    %cst_133 = arith.constant dense<0.000000e+00> : vector<4xf32>
    %458 = vector.multi_reduction <add>, %457, %cst_133 [1] : vector<4x32xf32> to vector<4xf32>
    %459 = vector.shape_cast %458 : vector<4xf32> to vector<4x1xf32>
    %cst_134 = arith.constant 3.200000e+01 : f32
    %460 = vector.broadcast %cst_134 : f32 to vector<4x1xf32>
    %461 = arith.divf %459, %460 : vector<4x1xf32>
    %462 = arith.mulf %456, %456 : vector<4x1xf32>
    %463 = arith.subf %461, %462 : vector<4x1xf32>
    %cst_135 = arith.constant 0.000000e+00 : f32
    %464 = vector.broadcast %cst_135 : f32 to vector<4x1xf32>
    %465 = arith.maximumf %463, %464 : vector<4x1xf32>
    %466 = vector.broadcast %456 : vector<4x1xf32> to vector<4x32xf32>
    %467 = arith.subf %452, %466 : vector<4x32xf32>
    %cst_136 = arith.constant 9.99999974E-6 : f32
    %468 = vector.broadcast %cst_136 : f32 to vector<4x1xf32>
    %469 = arith.addf %465, %468 : vector<4x1xf32>
    %470 = math.rsqrt %469 : vector<4x1xf32>
    %471 = vector.broadcast %470 : vector<4x1xf32> to vector<4x32xf32>
    %472 = arith.mulf %467, %471 : vector<4x32xf32>
    %473 = vector.broadcast %5 : vector<1x32xf32> to vector<4x32xf32>
    %474 = arith.mulf %472, %473 : vector<4x32xf32>
    %475 = vector.broadcast %6 : vector<1x32xf32> to vector<4x32xf32>
    %476 = arith.addf %474, %475 : vector<4x32xf32>
    %cst_137 = arith.constant 0.000000e+00 : f32
    %477 = vector.broadcast %cst_137 : f32 to vector<4x32xf32>
    %478 = arith.maximumf %476, %477 : vector<4x32xf32>
    %cst_138 = arith.constant dense<0.000000e+00> : vector<4x32xf32>
    %479 = tpu.matmul %478, %7, %cst_138 {dimension_numbers = #tpu.dot_dimension_numbers<[1], [0], [0], [1], [0, 0, 1, 1], [], []>} : vector<4x32xf32>, vector<32x32xf32>, vector<4x32xf32> -> vector<4x32xf32>
    %480 = arith.addf %479, %16 : vector<4x32xf32>
    %cst_139 = arith.constant dense<0.000000e+00> : vector<4xf32>
    %481 = vector.multi_reduction <add>, %480, %cst_139 [1] : vector<4x32xf32> to vector<4xf32>
    %482 = vector.shape_cast %481 : vector<4xf32> to vector<4x1xf32>
    %cst_140 = arith.constant 3.200000e+01 : f32
    %483 = vector.broadcast %cst_140 : f32 to vector<4x1xf32>
    %484 = arith.divf %482, %483 : vector<4x1xf32>
    %485 = arith.mulf %480, %480 : vector<4x32xf32>
    %cst_141 = arith.constant dense<0.000000e+00> : vector<4xf32>
    %486 = vector.multi_reduction <add>, %485, %cst_141 [1] : vector<4x32xf32> to vector<4xf32>
    %487 = vector.shape_cast %486 : vector<4xf32> to vector<4x1xf32>
    %cst_142 = arith.constant 3.200000e+01 : f32
    %488 = vector.broadcast %cst_142 : f32 to vector<4x1xf32>
    %489 = arith.divf %487, %488 : vector<4x1xf32>
    %490 = arith.mulf %484, %484 : vector<4x1xf32>
    %491 = arith.subf %489, %490 : vector<4x1xf32>
    %cst_143 = arith.constant 0.000000e+00 : f32
    %492 = vector.broadcast %cst_143 : f32 to vector<4x1xf32>
    %493 = arith.maximumf %491, %492 : vector<4x1xf32>
    %494 = vector.broadcast %484 : vector<4x1xf32> to vector<4x32xf32>
    %495 = arith.subf %480, %494 : vector<4x32xf32>
    %cst_144 = arith.constant 9.99999974E-6 : f32
    %496 = vector.broadcast %cst_144 : f32 to vector<4x1xf32>
    %497 = arith.addf %493, %496 : vector<4x1xf32>
    %498 = math.rsqrt %497 : vector<4x1xf32>
    %499 = vector.broadcast %498 : vector<4x1xf32> to vector<4x32xf32>
    %500 = arith.mulf %495, %499 : vector<4x32xf32>
    %501 = vector.broadcast %8 : vector<1x32xf32> to vector<4x32xf32>
    %502 = arith.mulf %500, %501 : vector<4x32xf32>
    %503 = vector.broadcast %9 : vector<1x32xf32> to vector<4x32xf32>
    %504 = arith.addf %502, %503 : vector<4x32xf32>
    %cst_145 = arith.constant 0.000000e+00 : f32
    %505 = vector.broadcast %cst_145 : f32 to vector<4x32xf32>
    %506 = arith.maximumf %504, %505 : vector<4x32xf32>
    %507 = vector.extract_strided_slice %12 {offsets = [0, 7], sizes = [4, 1], strides = [1, 1]} : vector<4x8xf32> to vector<4x1xf32>
    %508 = arith.subf %10, %507 : vector<4x1xf32>
    %509 = vector.extract_strided_slice %13 {offsets = [0, 7], sizes = [4, 1], strides = [1, 1]} : vector<4x8xf32> to vector<4x1xf32>
    %510 = arith.subf %11, %509 : vector<4x1xf32>
    %511 = vector.broadcast %508 : vector<4x1xf32> to vector<4x32xf32>
    %512 = vector.broadcast %1 : vector<1x32xf32> to vector<4x32xf32>
    %513 = arith.mulf %511, %512 : vector<4x32xf32>
    %514 = vector.broadcast %510 : vector<4x1xf32> to vector<4x32xf32>
    %515 = vector.broadcast %2 : vector<1x32xf32> to vector<4x32xf32>
    %516 = arith.mulf %514, %515 : vector<4x32xf32>
    %517 = arith.addf %513, %516 : vector<4x32xf32>
    %518 = vector.broadcast %3 : vector<1x32xf32> to vector<4x32xf32>
    %519 = arith.addf %517, %518 : vector<4x32xf32>
    %cst_146 = arith.constant 0.000000e+00 : f32
    %520 = vector.broadcast %cst_146 : f32 to vector<4x32xf32>
    %521 = arith.maximumf %519, %520 : vector<4x32xf32>
    %cst_147 = arith.constant dense<0.000000e+00> : vector<4x32xf32>
    %522 = tpu.matmul %521, %4, %cst_147 {dimension_numbers = #tpu.dot_dimension_numbers<[1], [0], [0], [1], [0, 0, 1, 1], [], []>} : vector<4x32xf32>, vector<32x32xf32>, vector<4x32xf32> -> vector<4x32xf32>
    %cst_148 = arith.constant dense<0.000000e+00> : vector<4xf32>
    %523 = vector.multi_reduction <add>, %522, %cst_148 [1] : vector<4x32xf32> to vector<4xf32>
    %524 = vector.shape_cast %523 : vector<4xf32> to vector<4x1xf32>
    %cst_149 = arith.constant 3.200000e+01 : f32
    %525 = vector.broadcast %cst_149 : f32 to vector<4x1xf32>
    %526 = arith.divf %524, %525 : vector<4x1xf32>
    %527 = arith.mulf %522, %522 : vector<4x32xf32>
    %cst_150 = arith.constant dense<0.000000e+00> : vector<4xf32>
    %528 = vector.multi_reduction <add>, %527, %cst_150 [1] : vector<4x32xf32> to vector<4xf32>
    %529 = vector.shape_cast %528 : vector<4xf32> to vector<4x1xf32>
    %cst_151 = arith.constant 3.200000e+01 : f32
    %530 = vector.broadcast %cst_151 : f32 to vector<4x1xf32>
    %531 = arith.divf %529, %530 : vector<4x1xf32>
    %532 = arith.mulf %526, %526 : vector<4x1xf32>
    %533 = arith.subf %531, %532 : vector<4x1xf32>
    %cst_152 = arith.constant 0.000000e+00 : f32
    %534 = vector.broadcast %cst_152 : f32 to vector<4x1xf32>
    %535 = arith.maximumf %533, %534 : vector<4x1xf32>
    %536 = vector.broadcast %526 : vector<4x1xf32> to vector<4x32xf32>
    %537 = arith.subf %522, %536 : vector<4x32xf32>
    %cst_153 = arith.constant 9.99999974E-6 : f32
    %538 = vector.broadcast %cst_153 : f32 to vector<4x1xf32>
    %539 = arith.addf %535, %538 : vector<4x1xf32>
    %540 = math.rsqrt %539 : vector<4x1xf32>
    %541 = vector.broadcast %540 : vector<4x1xf32> to vector<4x32xf32>
    %542 = arith.mulf %537, %541 : vector<4x32xf32>
    %543 = vector.broadcast %5 : vector<1x32xf32> to vector<4x32xf32>
    %544 = arith.mulf %542, %543 : vector<4x32xf32>
    %545 = vector.broadcast %6 : vector<1x32xf32> to vector<4x32xf32>
    %546 = arith.addf %544, %545 : vector<4x32xf32>
    %cst_154 = arith.constant 0.000000e+00 : f32
    %547 = vector.broadcast %cst_154 : f32 to vector<4x32xf32>
    %548 = arith.maximumf %546, %547 : vector<4x32xf32>
    %cst_155 = arith.constant dense<0.000000e+00> : vector<4x32xf32>
    %549 = tpu.matmul %548, %7, %cst_155 {dimension_numbers = #tpu.dot_dimension_numbers<[1], [0], [0], [1], [0, 0, 1, 1], [], []>} : vector<4x32xf32>, vector<32x32xf32>, vector<4x32xf32> -> vector<4x32xf32>
    %550 = arith.addf %549, %16 : vector<4x32xf32>
    %cst_156 = arith.constant dense<0.000000e+00> : vector<4xf32>
    %551 = vector.multi_reduction <add>, %550, %cst_156 [1] : vector<4x32xf32> to vector<4xf32>
    %552 = vector.shape_cast %551 : vector<4xf32> to vector<4x1xf32>
    %cst_157 = arith.constant 3.200000e+01 : f32
    %553 = vector.broadcast %cst_157 : f32 to vector<4x1xf32>
    %554 = arith.divf %552, %553 : vector<4x1xf32>
    %555 = arith.mulf %550, %550 : vector<4x32xf32>
    %cst_158 = arith.constant dense<0.000000e+00> : vector<4xf32>
    %556 = vector.multi_reduction <add>, %555, %cst_158 [1] : vector<4x32xf32> to vector<4xf32>
    %557 = vector.shape_cast %556 : vector<4xf32> to vector<4x1xf32>
    %cst_159 = arith.constant 3.200000e+01 : f32
    %558 = vector.broadcast %cst_159 : f32 to vector<4x1xf32>
    %559 = arith.divf %557, %558 : vector<4x1xf32>
    %560 = arith.mulf %554, %554 : vector<4x1xf32>
    %561 = arith.subf %559, %560 : vector<4x1xf32>
    %cst_160 = arith.constant 0.000000e+00 : f32
    %562 = vector.broadcast %cst_160 : f32 to vector<4x1xf32>
    %563 = arith.maximumf %561, %562 : vector<4x1xf32>
    %564 = vector.broadcast %554 : vector<4x1xf32> to vector<4x32xf32>
    %565 = arith.subf %550, %564 : vector<4x32xf32>
    %cst_161 = arith.constant 9.99999974E-6 : f32
    %566 = vector.broadcast %cst_161 : f32 to vector<4x1xf32>
    %567 = arith.addf %563, %566 : vector<4x1xf32>
    %568 = math.rsqrt %567 : vector<4x1xf32>
    %569 = vector.broadcast %568 : vector<4x1xf32> to vector<4x32xf32>
    %570 = arith.mulf %565, %569 : vector<4x32xf32>
    %571 = vector.broadcast %8 : vector<1x32xf32> to vector<4x32xf32>
    %572 = arith.mulf %570, %571 : vector<4x32xf32>
    %573 = vector.broadcast %9 : vector<1x32xf32> to vector<4x32xf32>
    %574 = arith.addf %572, %573 : vector<4x32xf32>
    %cst_162 = arith.constant 0.000000e+00 : f32
    %575 = vector.broadcast %cst_162 : f32 to vector<4x32xf32>
    %576 = arith.maximumf %574, %575 : vector<4x32xf32>
    %577 = tpu.concatenate %86, %156, %226, %296, %366, %436, %506, %576 in 1 : vector<4x32xf32>, vector<4x32xf32>, vector<4x32xf32>, vector<4x32xf32>, vector<4x32xf32>, vector<4x32xf32>, vector<4x32xf32>, vector<4x32xf32> -> vector<4x256xf32>
    %c0_163 = arith.constant 0 : index
    %c0_164 = arith.constant 0 : index
    %578 = vector.load %arg15[%c0_163, %c0_164] : memref<4x256xf32, #tpu.memory_space<vmem>>, vector<4x256xf32>
    tpu.vector_store %arg15[%c0_163, %c0_164], %577 {strides = array<i32>} : memref<4x256xf32, #tpu.memory_space<vmem>>, vector<4x256xf32>,
    return
  }
  func.func @transform_0(%arg0: i32) -> (i32, i32) {
    %c0_i32 = arith.constant 0 : i32
    %c0_i32_0 = arith.constant 0 : i32
    return %arg0, %c0_i32 : i32, i32
  }
  func.func @transform_1(%arg0: i32) -> (i32, i32) {
    %c0_i32 = arith.constant 0 : i32
    %c0_i32_0 = arith.constant 0 : i32
    return %arg0, %c0_i32 : i32, i32
  }
  func.func @transform_2(%arg0: i32) -> (i32, i32) {
    %c0_i32 = arith.constant 0 : i32
    %c0_i32_0 = arith.constant 0 : i32
    return %arg0, %c0_i32 : i32, i32
  }
  func.func @transform_3(%arg0: i32) -> (i32, i32) {
    %c0_i32 = arith.constant 0 : i32
    %c0_i32_0 = arith.constant 0 : i32
    return %arg0, %c0_i32 : i32, i32
  }
  func.func @transform_4(%arg0: i32) -> (i32, i32) {
    %c0_i32 = arith.constant 0 : i32
    %c0_i32_0 = arith.constant 0 : i32
    return %arg0, %c0_i32 : i32, i32
  }
  func.func @transform_5(%arg0: i32) -> (i32, i32) {
    %c0_i32 = arith.constant 0 : i32
    %c0_i32_0 = arith.constant 0 : i32
    %c0_i32_1 = arith.constant 0 : i32
    return %c0_i32, %c0_i32_0 : i32, i32
  }
  func.func @transform_6(%arg0: i32) -> (i32, i32) {
    %c0_i32 = arith.constant 0 : i32
    %c0_i32_0 = arith.constant 0 : i32
    %c0_i32_1 = arith.constant 0 : i32
    return %c0_i32, %c0_i32_0 : i32, i32
  }
  func.func @transform_7(%arg0: i32) -> (i32, i32) {
    %c0_i32 = arith.constant 0 : i32
    %c0_i32_0 = arith.constant 0 : i32
    %c0_i32_1 = arith.constant 0 : i32
    return %c0_i32, %c0_i32_0 : i32, i32
  }
  func.func @transform_8(%arg0: i32) -> (i32, i32) {
    %c0_i32 = arith.constant 0 : i32
    %c0_i32_0 = arith.constant 0 : i32
    %c0_i32_1 = arith.constant 0 : i32
    return %c0_i32, %c0_i32_0 : i32, i32
  }
  func.func @transform_9(%arg0: i32) -> (i32, i32) {
    %c0_i32 = arith.constant 0 : i32
    %c0_i32_0 = arith.constant 0 : i32
    %c0_i32_1 = arith.constant 0 : i32
    return %c0_i32, %c0_i32_0 : i32, i32
  }
  func.func @transform_10(%arg0: i32) -> (i32, i32) {
    %c0_i32 = arith.constant 0 : i32
    %c0_i32_0 = arith.constant 0 : i32
    %c0_i32_1 = arith.constant 0 : i32
    return %c0_i32, %c0_i32_0 : i32, i32
  }
  func.func @transform_11(%arg0: i32) -> (i32, i32) {
    %c0_i32 = arith.constant 0 : i32
    %c0_i32_0 = arith.constant 0 : i32
    %c0_i32_1 = arith.constant 0 : i32
    return %c0_i32, %c0_i32_0 : i32, i32
  }
  func.func @transform_12(%arg0: i32) -> (i32, i32) {
    %c0_i32 = arith.constant 0 : i32
    %c0_i32_0 = arith.constant 0 : i32
    %c0_i32_1 = arith.constant 0 : i32
    return %c0_i32, %c0_i32_0 : i32, i32
  }
  func.func @transform_13(%arg0: i32) -> (i32, i32) {
    %c0_i32 = arith.constant 0 : i32
    %c0_i32_0 = arith.constant 0 : i32
    %c0_i32_1 = arith.constant 0 : i32
    return %c0_i32, %c0_i32_0 : i32, i32
  }
  func.func @transform_14(%arg0: i32) -> (i32, i32) {
    %c0_i32 = arith.constant 0 : i32
    %c0_i32_0 = arith.constant 0 : i32
    return %arg0, %c0_i32 : i32, i32
  }
}

</mosaic_0001>

<llo_original>
// kernel: tpu_custom_call.1
$region0: #{tpu_custom_call.1}
  #allocation0 [shape = 'u32[]', space=smem, size = 0x4, offset = 0x4, fixed_abs, tag = 'smem constant byte address 0x4 - core index']
  #allocation1 [shape = 'u32[144,128]{1,0:T(1,128)}', space=vmem, size = 0x12000, scoped, tag = 'internal scratch']
  %s0 = inlined_call_operand.vmem [shape: f32[4,1], index: 0, kind: input, shape index: {}]
  %s1 = inlined_call_operand.vmem [shape: f32[4,1], index: 1, kind: input, shape index: {}]
  %s2 = inlined_call_operand.vmem [shape: f32[4,8], index: 2, kind: input, shape index: {}]
  %s3 = inlined_call_operand.vmem [shape: f32[4,8], index: 3, kind: input, shape index: {}]
  %s4 = inlined_call_operand.vmem [shape: f32[4,32], index: 4, kind: input, shape index: {}]
  %s5 = inlined_call_operand.vmem [shape: f32[2,32], index: 5, kind: input, shape index: {}]
  %s6 = inlined_call_operand.vmem [shape: f32[1,32], index: 6, kind: input, shape index: {}]
  %s7 = inlined_call_operand.hbm [shape: f32[32,32], index: 7, kind: input, shape index: {}]
  %s8 = inlined_call_operand.vmem [shape: f32[1,32], index: 8, kind: input, shape index: {}]
  %s9 = inlined_call_operand.vmem [shape: f32[1,32], index: 9, kind: input, shape index: {}]
  %s10 = inlined_call_operand.hbm [shape: f32[32,32], index: 10, kind: input, shape index: {}]
  %s11 = inlined_call_operand.hbm [shape: f32[32,32], index: 11, kind: input, shape index: {}]
  %s12 = inlined_call_operand.vmem [shape: f32[1,32], index: 12, kind: input, shape index: {}]
  %s13 = inlined_call_operand.vmem [shape: f32[1,32], index: 13, kind: input, shape index: {}]
  %s14 = inlined_call_operand.hbm [shape: f32[4,256], index: 14, kind: output, shape index: {}]
  %s15 = sld [smem:[#allocation0]]
  $region78: #{tpu_custom_call.1} parent=0
    _
  %s17 = ssub.s32 1, %s15
  %s18 = scalar_select 0, %s17, %s15
  $region1: #{tpu_custom_call.1} parent=0
    #allocation2 [shape = 'u8[16384]{0}', space=vmem, size = 0x4000, scoped, tag = 'input window, operand 7, single buffered']
    #allocation3 [shape = 's32[1]{0}', space=sflag, size = 0x4, scoped, tag = 'scoped memory for tpu_custom_call.1']
    #allocation4 [shape = 's32[1]{0}', space=sflag, size = 0x4, scoped, tag = 'scoped memory for tpu_custom_call.1']
    #allocation5 [shape = 'u8[16384]{0}', space=vmem, size = 0x4000, scoped, tag = 'input window, operand 10, single buffered']
    #allocation6 [shape = 's32[1]{0}', space=sflag, size = 0x4, scoped, tag = 'scoped memory for tpu_custom_call.1']
    #allocation7 [shape = 'u8[16384]{0}', space=vmem, size = 0x4000, scoped, tag = 'input window, operand 11, single buffered']
    #allocation8 [shape = 'u8[4096]{0}', space=vmem, size = 0x1000, scoped, tag = 'output window, operand 0, single buffered']
    %19 = vsyncpa [#allocation3], 0
    %20 = vsyncpa [#allocation6], 0
    %21 = vsyncpa [#allocation4], 0
    // Predicated region
    $region2: #{tpu_custom_call.1} parent=1 // pred_check
      _
    $region3: #{tpu_custom_call.1} parent=1 // pred_check_branch
      %23 = sbr.rel (0) target = $region5
    $region4: #{tpu_custom_call.1} parent=1 // pred_region
      _
    $region5: #{tpu_custom_call.1} parent=1 // pred_fallthru
      _
    // Predicated region
    $region6: #{tpu_custom_call.1} parent=1 // pred_check
      _
    $region7: #{tpu_custom_call.1} parent=1 // pred_check_branch
      %25 = sbr.rel (0) target = $region9
    $region8: #{tpu_custom_call.1} parent=1 // pred_region
      _
    $region9: #{tpu_custom_call.1} parent=1 // pred_fallthru
      _
    // Predicated region
    $region10: #{tpu_custom_call.1} parent=1 // pred_check
      _
    $region11: #{tpu_custom_call.1} parent=1 // pred_check_branch
      %27 = sbr.rel (0) target = $region13
    $region12: #{tpu_custom_call.1} parent=1 // pred_region
      _
    $region13: #{tpu_custom_call.1} parent=1 // pred_fallthru
      _
    // Predicated region
    $region14: #{tpu_custom_call.1} parent=1 // pred_check
      _
    $region15: #{tpu_custom_call.1} parent=1 // pred_check_branch
      %29 = sbr.rel (0) target = $region17
    $region16: #{tpu_custom_call.1} parent=1 // pred_region
      _
    $region17: #{tpu_custom_call.1} parent=1 // pred_fallthru
      _
    // Predicated region
    $region18: #{tpu_custom_call.1} parent=1 // pred_check
      _
    $region19: #{tpu_custom_call.1} parent=1 // pred_check_branch
      %31 = sbr.rel (0) target = $region21
    $region20: #{tpu_custom_call.1} parent=1 // pred_region
      _
    $region21: #{tpu_custom_call.1} parent=1 // pred_fallthru
      _
    // Predicated region
    $region22: #{tpu_custom_call.1} parent=1 // pred_check
      _
    $region23: #{tpu_custom_call.1} parent=1 // pred_check_branch
      %33 = sbr.rel (0) target = $region25
    $region24: #{tpu_custom_call.1} parent=1 // pred_region
      _
    $region25: #{tpu_custom_call.1} parent=1 // pred_fallthru
      _
    // Predicated region
    $region26: #{tpu_custom_call.1} parent=1 // pred_check
      _
    $region27: #{tpu_custom_call.1} parent=1 // pred_check_branch
      %35 = sbr.rel (0) target = $region29
    $region28: #{tpu_custom_call.1} parent=1 // pred_region
      _
    $region29: #{tpu_custom_call.1} parent=1 // pred_fallthru
      _
    // Predicated region
    $region30: #{tpu_custom_call.1} parent=1 // pred_check
      _
    $region31: #{tpu_custom_call.1} parent=1 // pred_check_branch
      %37 = sbr.rel (0) target = $region33
    $region32: #{tpu_custom_call.1} parent=1 // pred_region
      %s39 = ssub.s32 512, 512
      %40 = vsyncadd [#allocation3], %s39
      %s41 = sshll.u32 [#allocation2], 4
      %s42 = int_to_ptr.vmem [resolvable:$true] %s41
      %47 = dma.hbm_to_vmem [thread:$0]  %s7, 512, %s42, [#allocation3], 128, 128, 8
    $region33: #{tpu_custom_call.1} parent=1 // pred_fallthru
      _
    // Predicated region
    $region34: #{tpu_custom_call.1} parent=1 // pred_check
      _
    $region35: #{tpu_custom_call.1} parent=1 // pred_check_branch
      %49 = sbr.rel (0) target = $region37
    $region36: #{tpu_custom_call.1} parent=1 // pred_region
      _
    $region37: #{tpu_custom_call.1} parent=1 // pred_fallthru
      _
    // Predicated region
    $region38: #{tpu_custom_call.1} parent=1 // pred_check
      _
    $region39: #{tpu_custom_call.1} parent=1 // pred_check_branch
      %51 = sbr.rel (0) target = $region41
    $region40: #{tpu_custom_call.1} parent=1 // pred_region
      _
    $region41: #{tpu_custom_call.1} parent=1 // pred_fallthru
      _
    // Predicated region
    $region42: #{tpu_custom_call.1} parent=1 // pred_check
      _
    $region43: #{tpu_custom_call.1} parent=1 // pred_check_branch
      %53 = sbr.rel (0) target = $region45
    $region44: #{tpu_custom_call.1} parent=1 // pred_region
      %s55 = ssub.s32 512, 512
      %56 = vsyncadd [#allocation6], %s55
      %s57 = sshll.u32 [#allocation5], 4
      %s58 = int_to_ptr.vmem [resolvable:$true] %s57
      %63 = dma.hbm_to_vmem [thread:$0]  %s10, 512, %s58, [#allocation6], 128, 128, 8
    $region45: #{tpu_custom_call.1} parent=1 // pred_fallthru
      _
    // Predicated region
    $region46: #{tpu_custom_call.1} parent=1 // pred_check
      _
    $region47: #{tpu_custom_call.1} parent=1 // pred_check_branch
      %65 = sbr.rel (0) target = $region49
    $region48: #{tpu_custom_call.1} parent=1 // pred_region
      %s67 = ssub.s32 512, 512
      %68 = vsyncadd [#allocation6], %s67
      %s69 = sshll.u32 [#allocation7], 4
      %s70 = int_to_ptr.vmem [resolvable:$true] %s69
      %75 = dma.hbm_to_vmem [thread:$0]  %s11, 512, %s70, [#allocation6], 128, 128, 8
    $region49: #{tpu_custom_call.1} parent=1 // pred_fallthru
      _
    // Predicated region
    $region50: #{tpu_custom_call.1} parent=1 // pred_check
      _
    $region51: #{tpu_custom_call.1} parent=1 // pred_check_branch
      %77 = sbr.rel (0) target = $region53
    $region52: #{tpu_custom_call.1} parent=1 // pred_region
      _
    $region53: #{tpu_custom_call.1} parent=1 // pred_fallthru
      _
    // Predicated region
    $region54: #{tpu_custom_call.1} parent=1 // pred_check
      _
    $region55: #{tpu_custom_call.1} parent=1 // pred_check_branch
      %79 = sbr.rel (0) target = $region57
    $region56: #{tpu_custom_call.1} parent=1 // pred_region
      _
    $region57: #{tpu_custom_call.1} parent=1 // pred_fallthru
      _
    // Predicated region
    $region58: #{tpu_custom_call.1} parent=1 // pred_check
      _
    $region59: #{tpu_custom_call.1} parent=1 // pred_check_branch
      %81 = sbr.rel (0) target = $region61
    $region60: #{tpu_custom_call.1} parent=1 // pred_region
      %82 = dma.done [#allocation3], 512
    $region61: #{tpu_custom_call.1} parent=1 // pred_fallthru
      _
    // Predicated region
    $region62: #{tpu_custom_call.1} parent=1 // pred_check
      _
    $region63: #{tpu_custom_call.1} parent=1 // pred_check_branch
      %84 = sbr.rel (0) target = $region65
    $region64: #{tpu_custom_call.1} parent=1 // pred_region
      %85 = dma.done [#allocation6], 512
    $region65: #{tpu_custom_call.1} parent=1 // pred_fallthru
      _
    // Predicated region
    $region66: #{tpu_custom_call.1} parent=1 // pred_check
      _
    $region67: #{tpu_custom_call.1} parent=1 // pred_check_branch
      %87 = sbr.rel (0) target = $region69
    $region68: #{tpu_custom_call.1} parent=1 // pred_region
      %88 = dma.done [#allocation6], 512
    $region69: #{tpu_custom_call.1} parent=1 // pred_fallthru
      _
    %v89 = vld [vmem:[%s5] sm:$0x3]
    %v90 = vld [vmem:[%s6] sm:$0x1]
    %v91 = vld [vmem:[#allocation2] sm:$0xff]
    %v92 = vld [vmem:[#allocation2 + $0x8] sm:$0xff]
    %v93 = vld [vmem:[#allocation2 + $0x10] sm:$0xff]
    %v94 = vld [vmem:[#allocation2 + $0x18] sm:$0xff]
    %v95 = vld [vmem:[%s8] sm:$0x1]
    %v96 = vld [vmem:[%s9] sm:$0x1]
    %v97 = vld [vmem:[#allocation5] sm:$0xff]
    %v98 = vld [vmem:[#allocation5 + $0x8] sm:$0xff]
    %v99 = vld [vmem:[#allocation5 + $0x10] sm:$0xff]
    %v100 = vld [vmem:[#allocation5 + $0x18] sm:$0xff]
    %v101 = vld [vmem:[%s12] sm:$0x1]
    %v102 = vld [vmem:[%s13] sm:$0x1]
    %v103 = vld [vmem:[%s0] sm:$0xf]
    %v104 = vld [vmem:[%s1] sm:$0xf]
    %v105 = vld [vmem:[%s2] sm:$0xf]
    %v106 = vld [vmem:[%s3] sm:$0xf]
    %v107 = vld [vmem:[%s4] sm:$0xf]
    %v108 = vld [vmem:[#allocation7] sm:$0xff]
    %v109 = vld [vmem:[#allocation7 + $0x8] sm:$0xff]
    %v110 = vld [vmem:[#allocation7 + $0x10] sm:$0xff]
    %v111 = vld [vmem:[#allocation7 + $0x18] sm:$0xff]
    %vm112 = vcmask 261120
    %v114 = vsel %vm112, %v107, 0
    %116 = vmatprep.subr.mxu0 0.0
    %117 = vmatpush1.msra.mxu0 0.0
    %118 = vmatprep.subr.mxu0 0.0
    %119 = vmatpush1.msra.mxu0 0.0
    %120 = vmatprep.subr.mxu0 0.0
    %121 = vmatpush1.msra.mxu0 0.0
    %122 = vmatprep.subr.mxu0 0.0
    %123 = vmatpush1.msra.mxu0 0.0
    %124 = vmatprep.subr.mxu0 0.0
    %125 = vmatpush1.msra.mxu0 0.0
    %126 = vmatprep.subr.mxu0 0.0
    %127 = vmatpush1.msra.mxu0 0.0
    %128 = vmatprep.subr.mxu0 0.0
    %129 = vmatpush1.msra.mxu0 0.0
    %130 = vmatprep.subr.mxu0 0.0
    %131 = vmatpush1.msra.mxu0 0.0
    %132 = vmatprep.subr.mxu0 0.0
    %133 = vmatpush1.msra.mxu0 0.0
    %134 = vmatprep.subr.mxu0 0.0
    %135 = vmatpush1.msra.mxu0 0.0
    %136 = vmatprep.subr.mxu0 0.0
    %137 = vmatpush1.msra.mxu0 0.0
    %138 = vmatprep.subr.mxu0 0.0
    %139 = vmatpush1.msra.mxu0 0.0
    %140 = vmatprep.subr.mxu0 0.0
    %141 = vmatpush1.msra.mxu0 %v111
    %142 = vmatprep.subr.mxu0 0.0
    %143 = vmatpush1.msra.mxu0 %v110
    %144 = vmatprep.subr.mxu0 0.0
    %145 = vmatpush1.msra.mxu0 %v109
    %146 = vmatprep.subr.mxu0 0.0
    %147 = vmatpush1.msra.mxu0 %v108
    %148 = vmatprep.subr.mxu0 0.0
    %149 = vmatpush2.msra.mxu0 0.0
    %150 = vmatprep.subr.mxu0 0.0
    %151 = vmatpush2.msra.mxu0 0.0
    %152 = vmatprep.subr.mxu0 0.0
    %153 = vmatpush2.msra.mxu0 0.0
    %154 = vmatprep.subr.mxu0 0.0
    %155 = vmatpush2.msra.mxu0 0.0
    %156 = vmatprep.subr.mxu0 0.0
    %157 = vmatpush2.msra.mxu0 0.0
    %158 = vmatprep.subr.mxu0 0.0
    %159 = vmatpush2.msra.mxu0 0.0
    %160 = vmatprep.subr.mxu0 0.0
    %161 = vmatpush2.msra.mxu0 0.0
    %162 = vmatprep.subr.mxu0 0.0
    %163 = vmatpush2.msra.mxu0 0.0
    %164 = vmatprep.subr.mxu0 0.0
    %165 = vmatpush2.msra.mxu0 0.0
    %166 = vmatprep.subr.mxu0 0.0
    %167 = vmatpush2.msra.mxu0 0.0
    %168 = vmatprep.subr.mxu0 0.0
    %169 = vmatpush2.msra.mxu0 0.0
    %170 = vmatprep.subr.mxu0 0.0
    %171 = vmatpush2.msra.mxu0 0.0
    %172 = vmatprep.subr.mxu0 0.0
    %173 = vmatpush2.msra.mxu0 0.0
    %174 = vmatprep.subr.mxu0 0.0
    %175 = vmatpush2.msra.mxu0 0.0
    %176 = vmatprep.subr.mxu0 0.0
    %177 = vmatpush2.msra.mxu0 0.0
    %178 = vmatprep.subr.mxu0 0.0
    %179 = vmatpush2.msra.mxu0 0.0
    %180 = vmatprep.mubr.f32.mxu0 0.0
    %181 = vmatmul.mubr.f32.gmra.mxu0 %v114
    %v182 = vpop.f32.mrf.mxu0
    %v183 = vadd.f32 0.0, %v182
    %v184 = vpop.f32.mrf.mxu0
    %185 = vdwg.mxu0
    %v186 = vsub.f32 %v103, %v105
    %v187 = vsub.f32 %v104, %v106
    %189 = vset.pattern.permute.xlu0 0
    %190 = vperm.xlu0 %189, %v186
    %v191 = vpop.permute.xlu0 %190
    %v193 = vlaneseq
    %v194 = vshrl.u32 %v193, 7
    %v195 = vsub.s32 0, %v194
    %v196 = vrot.slane %v89, %v195
    %v197 = vmul.f32 %v191, %v196
    %199 = vset.pattern.permute.xlu0 0
    %200 = vperm.xlu0 %199, %v187
    %v201 = vpop.permute.xlu0 %200
    %v203 = vlaneseq
    %v204 = vshrl.u32 %v203, 7
    %v205 = vsub.s32 1, %v204
    %v206 = vrot.slane %v89, %v205
    %v207 = vmul.f32 %v201, %v206
    %v208 = vadd.f32 %v197, %v207
    %v210 = vlaneseq
    %v211 = vshrl.u32 %v210, 7
    %v212 = vsub.s32 0, %v211
    %v213 = vrot.slane %v90, %v212
    %v215 = vadd.f32 %v208, %v213
    %v216 = vmax.f32 %v215, 0.0
    %v218 = vsel %vm112, %v216, 0
    %220 = vmatprep.subr.mxu0 0.0
    %221 = vmatpush1.msra.mxu0 0.0
    %222 = vmatprep.subr.mxu0 0.0
    %223 = vmatpush1.msra.mxu0 0.0
    %224 = vmatprep.subr.mxu0 0.0
    %225 = vmatpush1.msra.mxu0 0.0
    %226 = vmatprep.subr.mxu0 0.0
    %227 = vmatpush1.msra.mxu0 0.0
    %228 = vmatprep.subr.mxu0 0.0
    %229 = vmatpush1.msra.mxu0 0.0
    %230 = vmatprep.subr.mxu0 0.0
    %231 = vmatpush1.msra.mxu0 0.0
    %232 = vmatprep.subr.mxu0 0.0
    %233 = vmatpush1.msra.mxu0 0.0
    %234 = vmatprep.subr.mxu0 0.0
    %235 = vmatpush1.msra.mxu0 0.0
    %236 = vmatprep.subr.mxu0 0.0
    %237 = vmatpush1.msra.mxu0 0.0
    %238 = vmatprep.subr.mxu0 0.0
    %239 = vmatpush1.msra.mxu0 0.0
    %240 = vmatprep.subr.mxu0 0.0
    %241 = vmatpush1.msra.mxu0 0.0
    %242 = vmatprep.subr.mxu0 0.0
    %243 = vmatpush1.msra.mxu0 0.0
    %244 = vmatprep.subr.mxu0 0.0
    %245 = vmatpush1.msra.mxu0 %v94
    %246 = vmatprep.subr.mxu0 0.0
    %247 = vmatpush1.msra.mxu0 %v93
    %248 = vmatprep.subr.mxu0 0.0
    %249 = vmatpush1.msra.mxu0 %v92
    %250 = vmatprep.subr.mxu0 0.0
    %251 = vmatpush1.msra.mxu0 %v91
    %252 = vmatprep.subr.mxu0 0.0
    %253 = vmatpush2.msra.mxu0 0.0
    %254 = vmatprep.subr.mxu0 0.0
    %255 = vmatpush2.msra.mxu0 0.0
    %256 = vmatprep.subr.mxu0 0.0
    %257 = vmatpush2.msra.mxu0 0.0
    %258 = vmatprep.subr.mxu0 0.0
    %259 = vmatpush2.msra.mxu0 0.0
    %260 = vmatprep.subr.mxu0 0.0
    %261 = vmatpush2.msra.mxu0 0.0
    %262 = vmatprep.subr.mxu0 0.0
    %263 = vmatpush2.msra.mxu0 0.0
    %264 = vmatprep.subr.mxu0 0.0
    %265 = vmatpush2.msra.mxu0 0.0
    %266 = vmatprep.subr.mxu0 0.0
    %267 = vmatpush2.msra.mxu0 0.0
    %268 = vmatprep.subr.mxu0 0.0
    %269 = vmatpush2.msra.mxu0 0.0
    %270 = vmatprep.subr.mxu0 0.0
    %271 = vmatpush2.msra.mxu0 0.0
    %272 = vmatprep.subr.mxu0 0.0
    %273 = vmatpush2.msra.mxu0 0.0
    %274 = vmatprep.subr.mxu0 0.0
    %275 = vmatpush2.msra.mxu0 0.0
    %276 = vmatprep.subr.mxu0 0.0
    %277 = vmatpush2.msra.mxu0 0.0
    %278 = vmatprep.subr.mxu0 0.0
    %279 = vmatpush2.msra.mxu0 0.0
    %280 = vmatprep.subr.mxu0 0.0
    %281 = vmatpush2.msra.mxu0 0.0
    %282 = vmatprep.subr.mxu0 0.0
    %283 = vmatpush2.msra.mxu0 0.0
    %284 = vmatprep.mubr.f32.mxu0 0.0
    %285 = vmatmul.mubr.f32.gmra.mxu0 %v218
    %v286 = vpop.f32.mrf.mxu0
    %v287 = vadd.f32 0.0, %v286
    %v288 = vpop.f32.mrf.mxu0
    %289 = vdwg.mxu0
    %vm290 = vcmask 257024
    %v291 = vsel %vm290, %v287, 0.0
    %292 = vadd.xlane.f32.xlu0 %v291
    %v293 = vpop.xlane.xlu0 %292
    %v294 = vrcp.pop 32.0
    %v295 = vmul.f32 %v293, %v294
    %v296 = vmul.f32 %v287, %v287
    %v297 = vsel %vm290, %v296, 0.0
    %298 = vadd.xlane.f32.xlu0 %v297
    %v299 = vpop.xlane.xlu0 %298
    %v300 = vmul.f32 %v299, %v294
    %v301 = vmul.f32 %v295, %v295
    %v302 = vsub.f32 %v300, %v301
    %v303 = vmax.f32 %v302, 0.0
    %v304 = vsub.f32 %v287, %v295
    %v305 = vadd.f32 %v303, 1e-05
    %v306 = vrsqrt.pop %v305
    %v307 = vmul.f32 %v304, %v306
    %v309 = vlaneseq
    %v310 = vshrl.u32 %v309, 7
    %v311 = vsub.s32 0, %v310
    %v312 = vrot.slane %v95, %v311
    %v314 = vmul.f32 %v307, %v312
    %v316 = vlaneseq
    %v317 = vshrl.u32 %v316, 7
    %v318 = vsub.s32 0, %v317
    %v319 = vrot.slane %v96, %v318
    %v321 = vadd.f32 %v314, %v319
    %v322 = vmax.f32 %v321, 0.0
    %v324 = vsel %vm112, %v322, 0
    %326 = vmatprep.subr.mxu0 0.0
    %327 = vmatpush1.msra.mxu0 0.0
    %328 = vmatprep.subr.mxu0 0.0
    %329 = vmatpush1.msra.mxu0 0.0
    %330 = vmatprep.subr.mxu0 0.0
    %331 = vmatpush1.msra.mxu0 0.0
    %332 = vmatprep.subr.mxu0 0.0
    %333 = vmatpush1.msra.mxu0 0.0
    %334 = vmatprep.subr.mxu0 0.0
    %335 = vmatpush1.msra.mxu0 0.0
    %336 = vmatprep.subr.mxu0 0.0
    %337 = vmatpush1.msra.mxu0 0.0
    %338 = vmatprep.subr.mxu0 0.0
    %339 = vmatpush1.msra.mxu0 0.0
    %340 = vmatprep.subr.mxu0 0.0
    %341 = vmatpush1.msra.mxu0 0.0
    %342 = vmatprep.subr.mxu0 0.0
    %343 = vmatpush1.msra.mxu0 0.0
    %344 = vmatprep.subr.mxu0 0.0
    %345 = vmatpush1.msra.mxu0 0.0
    %346 = vmatprep.subr.mxu0 0.0
    %347 = vmatpush1.msra.mxu0 0.0
    %348 = vmatprep.subr.mxu0 0.0
    %349 = vmatpush1.msra.mxu0 0.0
    %350 = vmatprep.subr.mxu0 0.0
    %351 = vmatpush1.msra.mxu0 %v100
    %352 = vmatprep.subr.mxu0 0.0
    %353 = vmatpush1.msra.mxu0 %v99
    %354 = vmatprep.subr.mxu0 0.0
    %355 = vmatpush1.msra.mxu0 %v98
    %356 = vmatprep.subr.mxu0 0.0
    %357 = vmatpush1.msra.mxu0 %v97
    %358 = vmatprep.subr.mxu0 0.0
    %359 = vmatpush2.msra.mxu0 0.0
    %360 = vmatprep.subr.mxu0 0.0
    %361 = vmatpush2.msra.mxu0 0.0
    %362 = vmatprep.subr.mxu0 0.0
    %363 = vmatpush2.msra.mxu0 0.0
    %364 = vmatprep.subr.mxu0 0.0
    %365 = vmatpush2.msra.mxu0 0.0
    %366 = vmatprep.subr.mxu0 0.0
    %367 = vmatpush2.msra.mxu0 0.0
    %368 = vmatprep.subr.mxu0 0.0
    %369 = vmatpush2.msra.mxu0 0.0
    %370 = vmatprep.subr.mxu0 0.0
    %371 = vmatpush2.msra.mxu0 0.0
    %372 = vmatprep.subr.mxu0 0.0
    %373 = vmatpush2.msra.mxu0 0.0
    %374 = vmatprep.subr.mxu0 0.0
    %375 = vmatpush2.msra.mxu0 0.0
    %376 = vmatprep.subr.mxu0 0.0
    %377 = vmatpush2.msra.mxu0 0.0
    %378 = vmatprep.subr.mxu0 0.0
    %379 = vmatpush2.msra.mxu0 0.0
    %380 = vmatprep.subr.mxu0 0.0
    %381 = vmatpush2.msra.mxu0 0.0
    %382 = vmatprep.subr.mxu0 0.0
    %383 = vmatpush2.msra.mxu0 0.0
    %384 = vmatprep.subr.mxu0 0.0
    %385 = vmatpush2.msra.mxu0 0.0
    %386 = vmatprep.subr.mxu0 0.0
    %387 = vmatpush2.msra.mxu0 0.0
    %388 = vmatprep.subr.mxu0 0.0
    %389 = vmatpush2.msra.mxu0 0.0
    %390 = vmatprep.mubr.f32.mxu0 0.0
    %391 = vmatmul.mubr.f32.gmra.mxu0 %v324
    %v392 = vpop.f32.mrf.mxu0
    %v393 = vadd.f32 %v183, %v392
    %v394 = vpop.f32.mrf.mxu0
    %395 = vdwg.mxu0
    %v396 = vsel %vm290, %v393, 0.0
    %397 = vadd.xlane.f32.xlu0 %v396
    %v398 = vpop.xlane.xlu0 %397
    %v399 = vmul.f32 %v398, %v294
    %v400 = vmul.f32 %v393, %v393
    %v401 = vsel %vm290, %v400, 0.0
    %402 = vadd.xlane.f32.xlu0 %v401
    %v403 = vpop.xlane.xlu0 %402
    %v404 = vmul.f32 %v403, %v294
    %v405 = vmul.f32 %v399, %v399
    %v406 = vsub.f32 %v404, %v405
    %v407 = vmax.f32 %v406, 0.0
    %v408 = vsub.f32 %v393, %v399
    %v409 = vadd.f32 %v407, 1e-05
    %v410 = vrsqrt.pop %v409
    %v411 = vmul.f32 %v408, %v410
    %v413 = vlaneseq
    %v414 = vshrl.u32 %v413, 7
    %v415 = vsub.s32 0, %v414
    %v416 = vrot.slane %v101, %v415
    %v418 = vmul.f32 %v411, %v416
    %v420 = vlaneseq
    %v421 = vshrl.u32 %v420, 7
    %v422 = vsub.s32 0, %v421
    %v423 = vrot.slane %v102, %v422
    %v425 = vadd.f32 %v418, %v423
    %v426 = vmax.f32 %v425, 0.0
    %428 = vrot.lane.b32.xlu0 %v105, 127
    %v429 = vpop.permute.xlu0 %428
    %v431 = vsub.f32 %v103, %v429
    %433 = vrot.lane.b32.xlu0 %v106, 127
    %v434 = vpop.permute.xlu0 %433
    %v436 = vsub.f32 %v104, %v434
    %438 = vset.pattern.permute.xlu0 0
    %439 = vperm.xlu0 %438, %v431
    %v440 = vpop.permute.xlu0 %439
    %v442 = vmul.f32 %v440, %v196
    %444 = vset.pattern.permute.xlu0 0
    %445 = vperm.xlu0 %444, %v436
    %v446 = vpop.permute.xlu0 %445
    %v448 = vmul.f32 %v446, %v206
    %v449 = vadd.f32 %v442, %v448
    %v450 = vadd.f32 %v449, %v213
    %v451 = vmax.f32 %v450, 0.0
    %v453 = vsel %vm112, %v451, 0
    %455 = vmatprep.subr.mxu0 0.0
    %456 = vmatpush1.msra.mxu0 0.0
    %457 = vmatprep.subr.mxu0 0.0
    %458 = vmatpush1.msra.mxu0 0.0
    %459 = vmatprep.subr.mxu0 0.0
    %460 = vmatpush1.msra.mxu0 0.0
    %461 = vmatprep.subr.mxu0 0.0
    %462 = vmatpush1.msra.mxu0 0.0
    %463 = vmatprep.subr.mxu0 0.0
    %464 = vmatpush1.msra.mxu0 0.0
    %465 = vmatprep.subr.mxu0 0.0
    %466 = vmatpush1.msra.mxu0 0.0
    %467 = vmatprep.subr.mxu0 0.0
    %468 = vmatpush1.msra.mxu0 0.0
    %469 = vmatprep.subr.mxu0 0.0
    %470 = vmatpush1.msra.mxu0 0.0
    %471 = vmatprep.subr.mxu0 0.0
    %472 = vmatpush1.msra.mxu0 0.0
    %473 = vmatprep.subr.mxu0 0.0
    %474 = vmatpush1.msra.mxu0 0.0
    %475 = vmatprep.subr.mxu0 0.0
    %476 = vmatpush1.msra.mxu0 0.0
    %477 = vmatprep.subr.mxu0 0.0
    %478 = vmatpush1.msra.mxu0 0.0
    %479 = vmatprep.subr.mxu0 0.0
    %480 = vmatpush1.msra.mxu0 %v94
    %481 = vmatprep.subr.mxu0 0.0
    %482 = vmatpush1.msra.mxu0 %v93
    %483 = vmatprep.subr.mxu0 0.0
    %484 = vmatpush1.msra.mxu0 %v92
    %485 = vmatprep.subr.mxu0 0.0
    %486 = vmatpush1.msra.mxu0 %v91
    %487 = vmatprep.subr.mxu0 0.0
    %488 = vmatpush2.msra.mxu0 0.0
    %489 = vmatprep.subr.mxu0 0.0
    %490 = vmatpush2.msra.mxu0 0.0
    %491 = vmatprep.subr.mxu0 0.0
    %492 = vmatpush2.msra.mxu0 0.0
    %493 = vmatprep.subr.mxu0 0.0
    %494 = vmatpush2.msra.mxu0 0.0
    %495 = vmatprep.subr.mxu0 0.0
    %496 = vmatpush2.msra.mxu0 0.0
    %497 = vmatprep.subr.mxu0 0.0
    %498 = vmatpush2.msra.mxu0 0.0
    %499 = vmatprep.subr.mxu0 0.0
    %500 = vmatpush2.msra.mxu0 0.0
    %501 = vmatprep.subr.mxu0 0.0
    %502 = vmatpush2.msra.mxu0 0.0
    %503 = vmatprep.subr.mxu0 0.0
    %504 = vmatpush2.msra.mxu0 0.0
    %505 = vmatprep.subr.mxu0 0.0
    %506 = vmatpush2.msra.mxu0 0.0
    %507 = vmatprep.subr.mxu0 0.0
    %508 = vmatpush2.msra.mxu0 0.0
    %509 = vmatprep.subr.mxu0 0.0
    %510 = vmatpush2.msra.mxu0 0.0
    %511 = vmatprep.subr.mxu0 0.0
    %512 = vmatpush2.msra.mxu0 0.0
    %513 = vmatprep.subr.mxu0 0.0
    %514 = vmatpush2.msra.mxu0 0.0
    %515 = vmatprep.subr.mxu0 0.0
    %516 = vmatpush2.msra.mxu0 0.0
    %517 = vmatprep.subr.mxu0 0.0
    %518 = vmatpush2.msra.mxu0 0.0
    %519 = vmatprep.mubr.f32.mxu0 0.0
    %520 = vmatmul.mubr.f32.gmra.mxu0 %v453
    %v521 = vpop.f32.mrf.mxu0
    %v522 = vadd.f32 0.0, %v521
    %v523 = vpop.f32.mrf.mxu0
    %524 = vdwg.mxu0
    %v525 = vsel %vm290, %v522, 0.0
    %526 = vadd.xlane.f32.xlu0 %v525
    %v527 = vpop.xlane.xlu0 %526
    %v528 = vmul.f32 %v527, %v294
    %v529 = vmul.f32 %v522, %v522
    %v530 = vsel %vm290, %v529, 0.0
    %531 = vadd.xlane.f32.xlu0 %v530
    %v532 = vpop.xlane.xlu0 %531
    %v533 = vmul.f32 %v532, %v294
    %v534 = vmul.f32 %v528, %v528
    %v535 = vsub.f32 %v533, %v534
    %v536 = vmax.f32 %v535, 0.0
    %v537 = vsub.f32 %v522, %v528
    %v538 = vadd.f32 %v536, 1e-05
    %v539 = vrsqrt.pop %v538
    %v540 = vmul.f32 %v537, %v539
    %v541 = vmul.f32 %v540, %v312
    %v542 = vadd.f32 %v541, %v319
    %v543 = vmax.f32 %v542, 0.0
    %v545 = vsel %vm112, %v543, 0
    %547 = vmatprep.subr.mxu0 0.0
    %548 = vmatpush1.msra.mxu0 0.0
    %549 = vmatprep.subr.mxu0 0.0
    %550 = vmatpush1.msra.mxu0 0.0
    %551 = vmatprep.subr.mxu0 0.0
    %552 = vmatpush1.msra.mxu0 0.0
    %553 = vmatprep.subr.mxu0 0.0
    %554 = vmatpush1.msra.mxu0 0.0
    %555 = vmatprep.subr.mxu0 0.0
    %556 = vmatpush1.msra.mxu0 0.0
    %557 = vmatprep.subr.mxu0 0.0
    %558 = vmatpush1.msra.mxu0 0.0
    %559 = vmatprep.subr.mxu0 0.0
    %560 = vmatpush1.msra.mxu0 0.0
    %561 = vmatprep.subr.mxu0 0.0
    %562 = vmatpush1.msra.mxu0 0.0
    %563 = vmatprep.subr.mxu0 0.0
    %564 = vmatpush1.msra.mxu0 0.0
    %565 = vmatprep.subr.mxu0 0.0
    %566 = vmatpush1.msra.mxu0 0.0
    %567 = vmatprep.subr.mxu0 0.0
    %568 = vmatpush1.msra.mxu0 0.0
    %569 = vmatprep.subr.mxu0 0.0
    %570 = vmatpush1.msra.mxu0 0.0
    %571 = vmatprep.subr.mxu0 0.0
    %572 = vmatpush1.msra.mxu0 %v100
    %573 = vmatprep.subr.mxu0 0.0
    %574 = vmatpush1.msra.mxu0 %v99
    %575 = vmatprep.subr.mxu0 0.0
    %576 = vmatpush1.msra.mxu0 %v98
    %577 = vmatprep.subr.mxu0 0.0
    %578 = vmatpush1.msra.mxu0 %v97
    %579 = vmatprep.subr.mxu0 0.0
    %580 = vmatpush2.msra.mxu0 0.0
    %581 = vmatprep.subr.mxu0 0.0
    %582 = vmatpush2.msra.mxu0 0.0
    %583 = vmatprep.subr.mxu0 0.0
    %584 = vmatpush2.msra.mxu0 0.0
    %585 = vmatprep.subr.mxu0 0.0
    %586 = vmatpush2.msra.mxu0 0.0
    %587 = vmatprep.subr.mxu0 0.0
    %588 = vmatpush2.msra.mxu0 0.0
    %589 = vmatprep.subr.mxu0 0.0
    %590 = vmatpush2.msra.mxu0 0.0
    %591 = vmatprep.subr.mxu0 0.0
    %592 = vmatpush2.msra.mxu0 0.0
    %593 = vmatprep.subr.mxu0 0.0
    %594 = vmatpush2.msra.mxu0 0.0
    %595 = vmatprep.subr.mxu0 0.0
    %596 = vmatpush2.msra.mxu0 0.0
    %597 = vmatprep.subr.mxu0 0.0
    %598 = vmatpush2.msra.mxu0 0.0
    %599 = vmatprep.subr.mxu0 0.0
    %600 = vmatpush2.msra.mxu0 0.0
    %601 = vmatprep.subr.mxu0 0.0
    %602 = vmatpush2.msra.mxu0 0.0
    %603 = vmatprep.subr.mxu0 0.0
    %604 = vmatpush2.msra.mxu0 0.0
    %605 = vmatprep.subr.mxu0 0.0
    %606 = vmatpush2.msra.mxu0 0.0
    %607 = vmatprep.subr.mxu0 0.0
    %608 = vmatpush2.msra.mxu0 0.0
    %609 = vmatprep.subr.mxu0 0.0
    %610 = vmatpush2.msra.mxu0 0.0
    %611 = vmatprep.mubr.f32.mxu0 0.0
    %612 = vmatmul.mubr.f32.gmra.mxu0 %v545
    %v613 = vpop.f32.mrf.mxu0
    %v614 = vadd.f32 %v183, %v613
    %v615 = vpop.f32.mrf.mxu0
    %616 = vdwg.mxu0
    %v617 = vsel %vm290, %v614, 0.0
    %618 = vadd.xlane.f32.xlu0 %v617
    %v619 = vpop.xlane.xlu0 %618
    %v620 = vmul.f32 %v619, %v294
    %v621 = vmul.f32 %v614, %v614
    %v622 = vsel %vm290, %v621, 0.0
    %623 = vadd.xlane.f32.xlu0 %v622
    %v624 = vpop.xlane.xlu0 %623
    %v625 = vmul.f32 %v624, %v294
    %v626 = vmul.f32 %v620, %v620
    %v627 = vsub.f32 %v625, %v626
    %v628 = vmax.f32 %v627, 0.0
    %v629 = vsub.f32 %v614, %v620
    %v630 = vadd.f32 %v628, 1e-05
    %v631 = vrsqrt.pop %v630
    %v632 = vmul.f32 %v629, %v631
    %v633 = vmul.f32 %v632, %v416
    %v634 = vadd.f32 %v633, %v423
    %v635 = vmax.f32 %v634, 0.0
    %636 = vrot.lane.b32.xlu0 %v105, 126
    %v637 = vpop.permute.xlu0 %636
    %v639 = vsub.f32 %v103, %v637
    %640 = vrot.lane.b32.xlu0 %v106, 126
    %v641 = vpop.permute.xlu0 %640
    %v643 = vsub.f32 %v104, %v641
    %645 = vset.pattern.permute.xlu0 0
    %646 = vperm.xlu0 %645, %v639
    %v647 = vpop.permute.xlu0 %646
    %v649 = vmul.f32 %v647, %v196
    %651 = vset.pattern.permute.xlu0 0
    %652 = vperm.xlu0 %651, %v643
    %v653 = vpop.permute.xlu0 %652
    %v655 = vmul.f32 %v653, %v206
    %v656 = vadd.f32 %v649, %v655
    %v657 = vadd.f32 %v656, %v213
    %v658 = vmax.f32 %v657, 0.0
    %v660 = vsel %vm112, %v658, 0
    %662 = vmatprep.subr.mxu0 0.0
    %663 = vmatpush1.msra.mxu0 0.0
    %664 = vmatprep.subr.mxu0 0.0
    %665 = vmatpush1.msra.mxu0 0.0
    %666 = vmatprep.subr.mxu0 0.0
    %667 = vmatpush1.msra.mxu0 0.0
    %668 = vmatprep.subr.mxu0 0.0
    %669 = vmatpush1.msra.mxu0 0.0
    %670 = vmatprep.subr.mxu0 0.0
    %671 = vmatpush1.msra.mxu0 0.0
    %672 = vmatprep.subr.mxu0 0.0
    %673 = vmatpush1.msra.mxu0 0.0
    %674 = vmatprep.subr.mxu0 0.0
    %675 = vmatpush1.msra.mxu0 0.0
    %676 = vmatprep.subr.mxu0 0.0
    %677 = vmatpush1.msra.mxu0 0.0
    %678 = vmatprep.subr.mxu0 0.0
    %679 = vmatpush1.msra.mxu0 0.0
    %680 = vmatprep.subr.mxu0 0.0
    %681 = vmatpush1.msra.mxu0 0.0
    %682 = vmatprep.subr.mxu0 0.0
    %683 = vmatpush1.msra.mxu0 0.0
    %684 = vmatprep.subr.mxu0 0.0
    %685 = vmatpush1.msra.mxu0 0.0
    %686 = vmatprep.subr.mxu0 0.0
    %687 = vmatpush1.msra.mxu0 %v94
    %688 = vmatprep.subr.mxu0 0.0
    %689 = vmatpush1.msra.mxu0 %v93
    %690 = vmatprep.subr.mxu0 0.0
    %691 = vmatpush1.msra.mxu0 %v92
    %692 = vmatprep.subr.mxu0 0.0
    %693 = vmatpush1.msra.mxu0 %v91
    %694 = vmatprep.subr.mxu0 0.0
    %695 = vmatpush2.msra.mxu0 0.0
    %696 = vmatprep.subr.mxu0 0.0
    %697 = vmatpush2.msra.mxu0 0.0
    %698 = vmatprep.subr.mxu0 0.0
    %699 = vmatpush2.msra.mxu0 0.0
    %700 = vmatprep.subr.mxu0 0.0
    %701 = vmatpush2.msra.mxu0 0.0
    %702 = vmatprep.subr.mxu0 0.0
    %703 = vmatpush2.msra.mxu0 0.0
    %704 = vmatprep.subr.mxu0 0.0
    %705 = vmatpush2.msra.mxu0 0.0
    %706 = vmatprep.subr.mxu0 0.0
    %707 = vmatpush2.msra.mxu0 0.0
    %708 = vmatprep.subr.mxu0 0.0
    %709 = vmatpush2.msra.mxu0 0.0
    %710 = vmatprep.subr.mxu0 0.0
    %711 = vmatpush2.msra.mxu0 0.0
    %712 = vmatprep.subr.mxu0 0.0
    %713 = vmatpush2.msra.mxu0 0.0
    %714 = vmatprep.subr.mxu0 0.0
    %715 = vmatpush2.msra.mxu0 0.0
    %716 = vmatprep.subr.mxu0 0.0
    %717 = vmatpush2.msra.mxu0 0.0
    %718 = vmatprep.subr.mxu0 0.0
    %719 = vmatpush2.msra.mxu0 0.0
    %720 = vmatprep.subr.mxu0 0.0
    %721 = vmatpush2.msra.mxu0 0.0
    %722 = vmatprep.subr.mxu0 0.0
    %723 = vmatpush2.msra.mxu0 0.0
    %724 = vmatprep.subr.mxu0 0.0
    %725 = vmatpush2.msra.mxu0 0.0
    %726 = vmatprep.mubr.f32.mxu0 0.0
    %727 = vmatmul.mubr.f32.gmra.mxu0 %v660
    %v728 = vpop.f32.mrf.mxu0
    %v729 = vadd.f32 0.0, %v728
    %v730 = vpop.f32.mrf.mxu0
    %731 = vdwg.mxu0
    %v732 = vsel %vm290, %v729, 0.0
    %733 = vadd.xlane.f32.xlu0 %v732
    %v734 = vpop.xlane.xlu0 %733
    %v735 = vmul.f32 %v734, %v294
    %v736 = vmul.f32 %v729, %v729
    %v737 = vsel %vm290, %v736, 0.0
    %738 = vadd.xlane.f32.xlu0 %v737
    %v739 = vpop.xlane.xlu0 %738
    %v740 = vmul.f32 %v739, %v294
    %v741 = vmul.f32 %v735, %v735
    %v742 = vsub.f32 %v740, %v741
    %v743 = vmax.f32 %v742, 0.0
    %v744 = vsub.f32 %v729, %v735
    %v745 = vadd.f32 %v743, 1e-05
    %v746 = vrsqrt.pop %v745
    %v747 = vmul.f32 %v744, %v746
    %v748 = vmul.f32 %v747, %v312
    %v749 = vadd.f32 %v748, %v319
    %v750 = vmax.f32 %v749, 0.0
    %v752 = vsel %vm112, %v750, 0
    %754 = vmatprep.subr.mxu0 0.0
    %755 = vmatpush1.msra.mxu0 0.0
    %756 = vmatprep.subr.mxu0 0.0
    %757 = vmatpush1.msra.mxu0 0.0
    %758 = vmatprep.subr.mxu0 0.0
    %759 = vmatpush1.msra.mxu0 0.0
    %760 = vmatprep.subr.mxu0 0.0
    %761 = vmatpush1.msra.mxu0 0.0
    %762 = vmatprep.subr.mxu0 0.0
    %763 = vmatpush1.msra.mxu0 0.0
    %764 = vmatprep.subr.mxu0 0.0
    %765 = vmatpush1.msra.mxu0 0.0
    %766 = vmatprep.subr.mxu0 0.0
    %767 = vmatpush1.msra.mxu0 0.0
    %768 = vmatprep.subr.mxu0 0.0
    %769 = vmatpush1.msra.mxu0 0.0
    %770 = vmatprep.subr.mxu0 0.0
    %771 = vmatpush1.msra.mxu0 0.0
    %772 = vmatprep.subr.mxu0 0.0
    %773 = vmatpush1.msra.mxu0 0.0
    %774 = vmatprep.subr.mxu0 0.0
    %775 = vmatpush1.msra.mxu0 0.0
    %776 = vmatprep.subr.mxu0 0.0
    %777 = vmatpush1.msra.mxu0 0.0
    %778 = vmatprep.subr.mxu0 0.0
    %779 = vmatpush1.msra.mxu0 %v100
    %780 = vmatprep.subr.mxu0 0.0
    %781 = vmatpush1.msra.mxu0 %v99
    %782 = vmatprep.subr.mxu0 0.0
    %783 = vmatpush1.msra.mxu0 %v98
    %784 = vmatprep.subr.mxu0 0.0
    %785 = vmatpush1.msra.mxu0 %v97
    %786 = vmatprep.subr.mxu0 0.0
    %787 = vmatpush2.msra.mxu0 0.0
    %788 = vmatprep.subr.mxu0 0.0
    %789 = vmatpush2.msra.mxu0 0.0
    %790 = vmatprep.subr.mxu0 0.0
    %791 = vmatpush2.msra.mxu0 0.0
    %792 = vmatprep.subr.mxu0 0.0
    %793 = vmatpush2.msra.mxu0 0.0
    %794 = vmatprep.subr.mxu0 0.0
    %795 = vmatpush2.msra.mxu0 0.0
    %796 = vmatprep.subr.mxu0 0.0
    %797 = vmatpush2.msra.mxu0 0.0
    %798 = vmatprep.subr.mxu0 0.0
    %799 = vmatpush2.msra.mxu0 0.0
    %800 = vmatprep.subr.mxu0 0.0
    %801 = vmatpush2.msra.mxu0 0.0
    %802 = vmatprep.subr.mxu0 0.0
    %803 = vmatpush2.msra.mxu0 0.0
    %804 = vmatprep.subr.mxu0 0.0
    %805 = vmatpush2.msra.mxu0 0.0
    %806 = vmatprep.subr.mxu0 0.0
    %807 = vmatpush2.msra.mxu0 0.0
    %808 = vmatprep.subr.mxu0 0.0
    %809 = vmatpush2.msra.mxu0 0.0
    %810 = vmatprep.subr.mxu0 0.0
    %811 = vmatpush2.msra.mxu0 0.0
    %812 = vmatprep.subr.mxu0 0.0
    %813 = vmatpush2.msra.mxu0 0.0
    %814 = vmatprep.subr.mxu0 0.0
    %815 = vmatpush2.msra.mxu0 0.0
    %816 = vmatprep.subr.mxu0 0.0
    %817 = vmatpush2.msra.mxu0 0.0
    %818 = vmatprep.mubr.f32.mxu0 0.0
    %819 = vmatmul.mubr.f32.gmra.mxu0 %v752
    %v820 = vpop.f32.mrf.mxu0
    %v821 = vadd.f32 %v183, %v820
    %v822 = vpop.f32.mrf.mxu0
    %823 = vdwg.mxu0
    %v824 = vsel %vm290, %v821, 0.0
    %825 = vadd.xlane.f32.xlu0 %v824
    %v826 = vpop.xlane.xlu0 %825
    %v827 = vmul.f32 %v826, %v294
    %v828 = vmul.f32 %v821, %v821
    %v829 = vsel %vm290, %v828, 0.0
    %830 = vadd.xlane.f32.xlu0 %v829
    %v831 = vpop.xlane.xlu0 %830
    %v832 = vmul.f32 %v831, %v294
    %v833 = vmul.f32 %v827, %v827
    %v834 = vsub.f32 %v832, %v833
    %v835 = vmax.f32 %v834, 0.0
    %v836 = vsub.f32 %v821, %v827
    %v837 = vadd.f32 %v835, 1e-05
    %v838 = vrsqrt.pop %v837
    %v839 = vmul.f32 %v836, %v838
    %v840 = vmul.f32 %v839, %v416
    %v841 = vadd.f32 %v840, %v423
    %v842 = vmax.f32 %v841, 0.0
    %843 = vrot.lane.b32.xlu0 %v105, 125
    %v844 = vpop.permute.xlu0 %843
    %v846 = vsub.f32 %v103, %v844
    %847 = vrot.lane.b32.xlu0 %v106, 125
    %v848 = vpop.permute.xlu0 %847
    %v850 = vsub.f32 %v104, %v848
    %852 = vset.pattern.permute.xlu0 0
    %853 = vperm.xlu0 %852, %v846
    %v854 = vpop.permute.xlu0 %853
    %v856 = vmul.f32 %v854, %v196
    %858 = vset.pattern.permute.xlu0 0
    %859 = vperm.xlu0 %858, %v850
    %v860 = vpop.permute.xlu0 %859
    %v862 = vmul.f32 %v860, %v206
    %v863 = vadd.f32 %v856, %v862
    %v864 = vadd.f32 %v863, %v213
    %v865 = vmax.f32 %v864, 0.0
    %v867 = vsel %vm112, %v865, 0
    %869 = vmatprep.subr.mxu0 0.0
    %870 = vmatpush1.msra.mxu0 0.0
    %871 = vmatprep.subr.mxu0 0.0
    %872 = vmatpush1.msra.mxu0 0.0
    %873 = vmatprep.subr.mxu0 0.0
    %874 = vmatpush1.msra.mxu0 0.0
    %875 = vmatprep.subr.mxu0 0.0
    %876 = vmatpush1.msra.mxu0 0.0
    %877 = vmatprep.subr.mxu0 0.0
    %878 = vmatpush1.msra.mxu0 0.0
    %879 = vmatprep.subr.mxu0 0.0
    %880 = vmatpush1.msra.mxu0 0.0
    %881 = vmatprep.subr.mxu0 0.0
    %882 = vmatpush1.msra.mxu0 0.0
    %883 = vmatprep.subr.mxu0 0.0
    %884 = vmatpush1.msra.mxu0 0.0
    %885 = vmatprep.subr.mxu0 0.0
    %886 = vmatpush1.msra.mxu0 0.0
    %887 = vmatprep.subr.mxu0 0.0
    %888 = vmatpush1.msra.mxu0 0.0
    %889 = vmatprep.subr.mxu0 0.0
    %890 = vmatpush1.msra.mxu0 0.0
    %891 = vmatprep.subr.mxu0 0.0
    %892 = vmatpush1.msra.mxu0 0.0
    %893 = vmatprep.subr.mxu0 0.0
    %894 = vmatpush1.msra.mxu0 %v94
    %895 = vmatprep.subr.mxu0 0.0
    %896 = vmatpush1.msra.mxu0 %v93
    %897 = vmatprep.subr.mxu0 0.0
    %898 = vmatpush1.msra.mxu0 %v92
    %899 = vmatprep.subr.mxu0 0.0
    %900 = vmatpush1.msra.mxu0 %v91
    %901 = vmatprep.subr.mxu0 0.0
    %902 = vmatpush2.msra.mxu0 0.0
    %903 = vmatprep.subr.mxu0 0.0
    %904 = vmatpush2.msra.mxu0 0.0
    %905 = vmatprep.subr.mxu0 0.0
    %906 = vmatpush2.msra.mxu0 0.0
    %907 = vmatprep.subr.mxu0 0.0
    %908 = vmatpush2.msra.mxu0 0.0
    %909 = vmatprep.subr.mxu0 0.0
    %910 = vmatpush2.msra.mxu0 0.0
    %911 = vmatprep.subr.mxu0 0.0
    %912 = vmatpush2.msra.mxu0 0.0
    %913 = vmatprep.subr.mxu0 0.0
    %914 = vmatpush2.msra.mxu0 0.0
    %915 = vmatprep.subr.mxu0 0.0
    %916 = vmatpush2.msra.mxu0 0.0
    %917 = vmatprep.subr.mxu0 0.0
    %918 = vmatpush2.msra.mxu0 0.0
    %919 = vmatprep.subr.mxu0 0.0
    %920 = vmatpush2.msra.mxu0 0.0
    %921 = vmatprep.subr.mxu0 0.0
    %922 = vmatpush2.msra.mxu0 0.0
    %923 = vmatprep.subr.mxu0 0.0
    %924 = vmatpush2.msra.mxu0 0.0
    %925 = vmatprep.subr.mxu0 0.0
    %926 = vmatpush2.msra.mxu0 0.0
    %927 = vmatprep.subr.mxu0 0.0
    %928 = vmatpush2.msra.mxu0 0.0
    %929 = vmatprep.subr.mxu0 0.0
    %930 = vmatpush2.msra.mxu0 0.0
    %931 = vmatprep.subr.mxu0 0.0
    %932 = vmatpush2.msra.mxu0 0.0
    %933 = vmatprep.mubr.f32.mxu0 0.0
    %934 = vmatmul.mubr.f32.gmra.mxu0 %v867
    %v935 = vpop.f32.mrf.mxu0
    %v936 = vadd.f32 0.0, %v935
    %v937 = vpop.f32.mrf.mxu0
    %938 = vdwg.mxu0
    %v939 = vsel %vm290, %v936, 0.0
    %940 = vadd.xlane.f32.xlu0 %v939
    %v941 = vpop.xlane.xlu0 %940
    %v942 = vmul.f32 %v941, %v294
    %v943 = vmul.f32 %v936, %v936
    %v944 = vsel %vm290, %v943, 0.0
    %945 = vadd.xlane.f32.xlu0 %v944
    %v946 = vpop.xlane.xlu0 %945
    %v947 = vmul.f32 %v946, %v294
    %v948 = vmul.f32 %v942, %v942
    %v949 = vsub.f32 %v947, %v948
    %v950 = vmax.f32 %v949, 0.0
    %v951 = vsub.f32 %v936, %v942
    %v952 = vadd.f32 %v950, 1e-05
    %v953 = vrsqrt.pop %v952
    %v954 = vmul.f32 %v951, %v953
    %v955 = vmul.f32 %v954, %v312
    %v956 = vadd.f32 %v955, %v319
    %v957 = vmax.f32 %v956, 0.0
    %v959 = vsel %vm112, %v957, 0
    %961 = vmatprep.subr.mxu0 0.0
    %962 = vmatpush1.msra.mxu0 0.0
    %963 = vmatprep.subr.mxu0 0.0
    %964 = vmatpush1.msra.mxu0 0.0
    %965 = vmatprep.subr.mxu0 0.0
    %966 = vmatpush1.msra.mxu0 0.0
    %967 = vmatprep.subr.mxu0 0.0
    %968 = vmatpush1.msra.mxu0 0.0
    %969 = vmatprep.subr.mxu0 0.0
    %970 = vmatpush1.msra.mxu0 0.0
    %971 = vmatprep.subr.mxu0 0.0
    %972 = vmatpush1.msra.mxu0 0.0
    %973 = vmatprep.subr.mxu0 0.0
    %974 = vmatpush1.msra.mxu0 0.0
    %975 = vmatprep.subr.mxu0 0.0
    %976 = vmatpush1.msra.mxu0 0.0
    %977 = vmatprep.subr.mxu0 0.0
    %978 = vmatpush1.msra.mxu0 0.0
    %979 = vmatprep.subr.mxu0 0.0
    %980 = vmatpush1.msra.mxu0 0.0
    %981 = vmatprep.subr.mxu0 0.0
    %982 = vmatpush1.msra.mxu0 0.0
    %983 = vmatprep.subr.mxu0 0.0
    %984 = vmatpush1.msra.mxu0 0.0
    %985 = vmatprep.subr.mxu0 0.0
    %986 = vmatpush1.msra.mxu0 %v100
    %987 = vmatprep.subr.mxu0 0.0
    %988 = vmatpush1.msra.mxu0 %v99
    %989 = vmatprep.subr.mxu0 0.0
    %990 = vmatpush1.msra.mxu0 %v98
    %991 = vmatprep.subr.mxu0 0.0
    %992 = vmatpush1.msra.mxu0 %v97
    %993 = vmatprep.subr.mxu0 0.0
    %994 = vmatpush2.msra.mxu0 0.0
    %995 = vmatprep.subr.mxu0 0.0
    %996 = vmatpush2.msra.mxu0 0.0
    %997 = vmatprep.subr.mxu0 0.0
    %998 = vmatpush2.msra.mxu0 0.0
    %999 = vmatprep.subr.mxu0 0.0
    %1000 = vmatpush2.msra.mxu0 0.0
    %1001 = vmatprep.subr.mxu0 0.0
    %1002 = vmatpush2.msra.mxu0 0.0
    %1003 = vmatprep.subr.mxu0 0.0
    %1004 = vmatpush2.msra.mxu0 0.0
    %1005 = vmatprep.subr.mxu0 0.0
    %1006 = vmatpush2.msra.mxu0 0.0
    %1007 = vmatprep.subr.mxu0 0.0
    %1008 = vmatpush2.msra.mxu0 0.0
    %1009 = vmatprep.subr.mxu0 0.0
    %1010 = vmatpush2.msra.mxu0 0.0
    %1011 = vmatprep.subr.mxu0 0.0
    %1012 = vmatpush2.msra.mxu0 0.0
    %1013 = vmatprep.subr.mxu0 0.0
    %1014 = vmatpush2.msra.mxu0 0.0
    %1015 = vmatprep.subr.mxu0 0.0
    %1016 = vmatpush2.msra.mxu0 0.0
    %1017 = vmatprep.subr.mxu0 0.0
    %1018 = vmatpush2.msra.mxu0 0.0
    %1019 = vmatprep.subr.mxu0 0.0
    %1020 = vmatpush2.msra.mxu0 0.0
    %1021 = vmatprep.subr.mxu0 0.0
    %1022 = vmatpush2.msra.mxu0 0.0
    %1023 = vmatprep.subr.mxu0 0.0
    %1024 = vmatpush2.msra.mxu0 0.0
    %1025 = vmatprep.mubr.f32.mxu0 0.0
    %1026 = vmatmul.mubr.f32.gmra.mxu0 %v959
    %v1027 = vpop.f32.mrf.mxu0
    %v1028 = vadd.f32 %v183, %v1027
    %v1029 = vpop.f32.mrf.mxu0
    %1030 = vdwg.mxu0
    %v1031 = vsel %vm290, %v1028, 0.0
    %1032 = vadd.xlane.f32.xlu0 %v1031
    %v1033 = vpop.xlane.xlu0 %1032
    %v1034 = vmul.f32 %v1033, %v294
    %v1035 = vmul.f32 %v1028, %v1028
    %v1036 = vsel %vm290, %v1035, 0.0
    %1037 = vadd.xlane.f32.xlu0 %v1036
    %v1038 = vpop.xlane.xlu0 %1037
    %v1039 = vmul.f32 %v1038, %v294
    %v1040 = vmul.f32 %v1034, %v1034
    %v1041 = vsub.f32 %v1039, %v1040
    %v1042 = vmax.f32 %v1041, 0.0
    %v1043 = vsub.f32 %v1028, %v1034
    %v1044 = vadd.f32 %v1042, 1e-05
    %v1045 = vrsqrt.pop %v1044
    %v1046 = vmul.f32 %v1043, %v1045
    %v1047 = vmul.f32 %v1046, %v416
    %v1048 = vadd.f32 %v1047, %v423
    %v1049 = vmax.f32 %v1048, 0.0
    %1050 = vrot.lane.b32.xlu0 %v105, 124
    %v1051 = vpop.permute.xlu0 %1050
    %v1053 = vsub.f32 %v103, %v1051
    %1054 = vrot.lane.b32.xlu0 %v106, 124
    %v1055 = vpop.permute.xlu0 %1054
    %v1057 = vsub.f32 %v104, %v1055
    %1059 = vset.pattern.permute.xlu0 0
    %1060 = vperm.xlu0 %1059, %v1053
    %v1061 = vpop.permute.xlu0 %1060
    %v1063 = vmul.f32 %v1061, %v196
    %1065 = vset.pattern.permute.xlu0 0
    %1066 = vperm.xlu0 %1065, %v1057
    %v1067 = vpop.permute.xlu0 %1066
    %v1069 = vmul.f32 %v1067, %v206
    %v1070 = vadd.f32 %v1063, %v1069
    %v1071 = vadd.f32 %v1070, %v213
    %v1072 = vmax.f32 %v1071, 0.0
    %v1074 = vsel %vm112, %v1072, 0
    %1076 = vmatprep.subr.mxu0 0.0
    %1077 = vmatpush1.msra.mxu0 0.0
    %1078 = vmatprep.subr.mxu0 0.0
    %1079 = vmatpush1.msra.mxu0 0.0
    %1080 = vmatprep.subr.mxu0 0.0
    %1081 = vmatpush1.msra.mxu0 0.0
    %1082 = vmatprep.subr.mxu0 0.0
    %1083 = vmatpush1.msra.mxu0 0.0
    %1084 = vmatprep.subr.mxu0 0.0
    %1085 = vmatpush1.msra.mxu0 0.0
    %1086 = vmatprep.subr.mxu0 0.0
    %1087 = vmatpush1.msra.mxu0 0.0
    %1088 = vmatprep.subr.mxu0 0.0
    %1089 = vmatpush1.msra.mxu0 0.0
    %1090 = vmatprep.subr.mxu0 0.0
    %1091 = vmatpush1.msra.mxu0 0.0
    %1092 = vmatprep.subr.mxu0 0.0
    %1093 = vmatpush1.msra.mxu0 0.0
    %1094 = vmatprep.subr.mxu0 0.0
    %1095 = vmatpush1.msra.mxu0 0.0
    %1096 = vmatprep.subr.mxu0 0.0
    %1097 = vmatpush1.msra.mxu0 0.0
    %1098 = vmatprep.subr.mxu0 0.0
    %1099 = vmatpush1.msra.mxu0 0.0
    %1100 = vmatprep.subr.mxu0 0.0
    %1101 = vmatpush1.msra.mxu0 %v94
    %1102 = vmatprep.subr.mxu0 0.0
    %1103 = vmatpush1.msra.mxu0 %v93
    %1104 = vmatprep.subr.mxu0 0.0
    %1105 = vmatpush1.msra.mxu0 %v92
    %1106 = vmatprep.subr.mxu0 0.0
    %1107 = vmatpush1.msra.mxu0 %v91
    %1108 = vmatprep.subr.mxu0 0.0
    %1109 = vmatpush2.msra.mxu0 0.0
    %1110 = vmatprep.subr.mxu0 0.0
    %1111 = vmatpush2.msra.mxu0 0.0
    %1112 = vmatprep.subr.mxu0 0.0
    %1113 = vmatpush2.msra.mxu0 0.0
    %1114 = vmatprep.subr.mxu0 0.0
    %1115 = vmatpush2.msra.mxu0 0.0
    %1116 = vmatprep.subr.mxu0 0.0
    %1117 = vmatpush2.msra.mxu0 0.0
    %1118 = vmatprep.subr.mxu0 0.0
    %1119 = vmatpush2.msra.mxu0 0.0
    %1120 = vmatprep.subr.mxu0 0.0
    %1121 = vmatpush2.msra.mxu0 0.0
    %1122 = vmatprep.subr.mxu0 0.0
    %1123 = vmatpush2.msra.mxu0 0.0
    %1124 = vmatprep.subr.mxu0 0.0
    %1125 = vmatpush2.msra.mxu0 0.0
    %1126 = vmatprep.subr.mxu0 0.0
    %1127 = vmatpush2.msra.mxu0 0.0
    %1128 = vmatprep.subr.mxu0 0.0
    %1129 = vmatpush2.msra.mxu0 0.0
    %1130 = vmatprep.subr.mxu0 0.0
    %1131 = vmatpush2.msra.mxu0 0.0
    %1132 = vmatprep.subr.mxu0 0.0
    %1133 = vmatpush2.msra.mxu0 0.0
    %1134 = vmatprep.subr.mxu0 0.0
    %1135 = vmatpush2.msra.mxu0 0.0
    %1136 = vmatprep.subr.mxu0 0.0
    %1137 = vmatpush2.msra.mxu0 0.0
    %1138 = vmatprep.subr.mxu0 0.0
    %1139 = vmatpush2.msra.mxu0 0.0
    %1140 = vmatprep.mubr.f32.mxu0 0.0
    %1141 = vmatmul.mubr.f32.gmra.mxu0 %v1074
    %v1142 = vpop.f32.mrf.mxu0
    %v1143 = vadd.f32 0.0, %v1142
    %v1144 = vpop.f32.mrf.mxu0
    %1145 = vdwg.mxu0
    %v1146 = vsel %vm290, %v1143, 0.0
    %1147 = vadd.xlane.f32.xlu0 %v1146
    %v1148 = vpop.xlane.xlu0 %1147
    %v1149 = vmul.f32 %v1148, %v294
    %v1150 = vmul.f32 %v1143, %v1143
    %v1151 = vsel %vm290, %v1150, 0.0
    %1152 = vadd.xlane.f32.xlu0 %v1151
    %v1153 = vpop.xlane.xlu0 %1152
    %v1154 = vmul.f32 %v1153, %v294
    %v1155 = vmul.f32 %v1149, %v1149
    %v1156 = vsub.f32 %v1154, %v1155
    %v1157 = vmax.f32 %v1156, 0.0
    %v1158 = vsub.f32 %v1143, %v1149
    %v1159 = vadd.f32 %v1157, 1e-05
    %v1160 = vrsqrt.pop %v1159
    %v1161 = vmul.f32 %v1158, %v1160
    %v1162 = vmul.f32 %v1161, %v312
    %v1163 = vadd.f32 %v1162, %v319
    %v1164 = vmax.f32 %v1163, 0.0
    %v1166 = vsel %vm112, %v1164, 0
    %1168 = vmatprep.subr.mxu0 0.0
    %1169 = vmatpush1.msra.mxu0 0.0
    %1170 = vmatprep.subr.mxu0 0.0
    %1171 = vmatpush1.msra.mxu0 0.0
    %1172 = vmatprep.subr.mxu0 0.0
    %1173 = vmatpush1.msra.mxu0 0.0
    %1174 = vmatprep.subr.mxu0 0.0
    %1175 = vmatpush1.msra.mxu0 0.0
    %1176 = vmatprep.subr.mxu0 0.0
    %1177 = vmatpush1.msra.mxu0 0.0
    %1178 = vmatprep.subr.mxu0 0.0
    %1179 = vmatpush1.msra.mxu0 0.0
    %1180 = vmatprep.subr.mxu0 0.0
    %1181 = vmatpush1.msra.mxu0 0.0
    %1182 = vmatprep.subr.mxu0 0.0
    %1183 = vmatpush1.msra.mxu0 0.0
    %1184 = vmatprep.subr.mxu0 0.0
    %1185 = vmatpush1.msra.mxu0 0.0
    %1186 = vmatprep.subr.mxu0 0.0
    %1187 = vmatpush1.msra.mxu0 0.0
    %1188 = vmatprep.subr.mxu0 0.0
    %1189 = vmatpush1.msra.mxu0 0.0
    %1190 = vmatprep.subr.mxu0 0.0
    %1191 = vmatpush1.msra.mxu0 0.0
    %1192 = vmatprep.subr.mxu0 0.0
    %1193 = vmatpush1.msra.mxu0 %v100
    %1194 = vmatprep.subr.mxu0 0.0
    %1195 = vmatpush1.msra.mxu0 %v99
    %1196 = vmatprep.subr.mxu0 0.0
    %1197 = vmatpush1.msra.mxu0 %v98
    %1198 = vmatprep.subr.mxu0 0.0
    %1199 = vmatpush1.msra.mxu0 %v97
    %1200 = vmatprep.subr.mxu0 0.0
    %1201 = vmatpush2.msra.mxu0 0.0
    %1202 = vmatprep.subr.mxu0 0.0
    %1203 = vmatpush2.msra.mxu0 0.0
    %1204 = vmatprep.subr.mxu0 0.0
    %1205 = vmatpush2.msra.mxu0 0.0
    %1206 = vmatprep.subr.mxu0 0.0
    %1207 = vmatpush2.msra.mxu0 0.0
    %1208 = vmatprep.subr.mxu0 0.0
    %1209 = vmatpush2.msra.mxu0 0.0
    %1210 = vmatprep.subr.mxu0 0.0
    %1211 = vmatpush2.msra.mxu0 0.0
    %1212 = vmatprep.subr.mxu0 0.0
    %1213 = vmatpush2.msra.mxu0 0.0
    %1214 = vmatprep.subr.mxu0 0.0
    %1215 = vmatpush2.msra.mxu0 0.0
    %1216 = vmatprep.subr.mxu0 0.0
    %1217 = vmatpush2.msra.mxu0 0.0
    %1218 = vmatprep.subr.mxu0 0.0
    %1219 = vmatpush2.msra.mxu0 0.0
    %1220 = vmatprep.subr.mxu0 0.0
    %1221 = vmatpush2.msra.mxu0 0.0
    %1222 = vmatprep.subr.mxu0 0.0
    %1223 = vmatpush2.msra.mxu0 0.0
    %1224 = vmatprep.subr.mxu0 0.0
    %1225 = vmatpush2.msra.mxu0 0.0
    %1226 = vmatprep.subr.mxu0 0.0
    %1227 = vmatpush2.msra.mxu0 0.0
    %1228 = vmatprep.subr.mxu0 0.0
    %1229 = vmatpush2.msra.mxu0 0.0
    %1230 = vmatprep.subr.mxu0 0.0
    %1231 = vmatpush2.msra.mxu0 0.0
    %1232 = vmatprep.mubr.f32.mxu0 0.0
    %1233 = vmatmul.mubr.f32.gmra.mxu0 %v1166
    %v1234 = vpop.f32.mrf.mxu0
    %v1235 = vadd.f32 %v183, %v1234
    %v1236 = vpop.f32.mrf.mxu0
    %1237 = vdwg.mxu0
    %v1238 = vsel %vm290, %v1235, 0.0
    %1239 = vadd.xlane.f32.xlu0 %v1238
    %v1240 = vpop.xlane.xlu0 %1239
    %v1241 = vmul.f32 %v1240, %v294
    %v1242 = vmul.f32 %v1235, %v1235
    %v1243 = vsel %vm290, %v1242, 0.0
    %1244 = vadd.xlane.f32.xlu0 %v1243
    %v1245 = vpop.xlane.xlu0 %1244
    %v1246 = vmul.f32 %v1245, %v294
    %v1247 = vmul.f32 %v1241, %v1241
    %v1248 = vsub.f32 %v1246, %v1247
    %v1249 = vmax.f32 %v1248, 0.0
    %v1250 = vsub.f32 %v1235, %v1241
    %v1251 = vadd.f32 %v1249, 1e-05
    %v1252 = vrsqrt.pop %v1251
    %v1253 = vmul.f32 %v1250, %v1252
    %v1254 = vmul.f32 %v1253, %v416
    %v1255 = vadd.f32 %v1254, %v423
    %v1256 = vmax.f32 %v1255, 0.0
    %1257 = vrot.lane.b32.xlu0 %v105, 123
    %v1258 = vpop.permute.xlu0 %1257
    %v1260 = vsub.f32 %v103, %v1258
    %1261 = vrot.lane.b32.xlu0 %v106, 123
    %v1262 = vpop.permute.xlu0 %1261
    %v1264 = vsub.f32 %v104, %v1262
    %1266 = vset.pattern.permute.xlu0 0
    %1267 = vperm.xlu0 %1266, %v1260
    %v1268 = vpop.permute.xlu0 %1267
    %v1270 = vmul.f32 %v1268, %v196
    %1272 = vset.pattern.permute.xlu0 0
    %1273 = vperm.xlu0 %1272, %v1264
    %v1274 = vpop.permute.xlu0 %1273
    %v1276 = vmul.f32 %v1274, %v206
    %v1277 = vadd.f32 %v1270, %v1276
    %v1278 = vadd.f32 %v1277, %v213
    %v1279 = vmax.f32 %v1278, 0.0
    %v1281 = vsel %vm112, %v1279, 0
    %1283 = vmatprep.subr.mxu0 0.0
    %1284 = vmatpush1.msra.mxu0 0.0
    %1285 = vmatprep.subr.mxu0 0.0
    %1286 = vmatpush1.msra.mxu0 0.0
    %1287 = vmatprep.subr.mxu0 0.0
    %1288 = vmatpush1.msra.mxu0 0.0
    %1289 = vmatprep.subr.mxu0 0.0
    %1290 = vmatpush1.msra.mxu0 0.0
    %1291 = vmatprep.subr.mxu0 0.0
    %1292 = vmatpush1.msra.mxu0 0.0
    %1293 = vmatprep.subr.mxu0 0.0
    %1294 = vmatpush1.msra.mxu0 0.0
    %1295 = vmatprep.subr.mxu0 0.0
    %1296 = vmatpush1.msra.mxu0 0.0
    %1297 = vmatprep.subr.mxu0 0.0
    %1298 = vmatpush1.msra.mxu0 0.0
    %1299 = vmatprep.subr.mxu0 0.0
    %1300 = vmatpush1.msra.mxu0 0.0
    %1301 = vmatprep.subr.mxu0 0.0
    %1302 = vmatpush1.msra.mxu0 0.0
    %1303 = vmatprep.subr.mxu0 0.0
    %1304 = vmatpush1.msra.mxu0 0.0
    %1305 = vmatprep.subr.mxu0 0.0
    %1306 = vmatpush1.msra.mxu0 0.0
    %1307 = vmatprep.subr.mxu0 0.0
    %1308 = vmatpush1.msra.mxu0 %v94
    %1309 = vmatprep.subr.mxu0 0.0
    %1310 = vmatpush1.msra.mxu0 %v93
    %1311 = vmatprep.subr.mxu0 0.0
    %1312 = vmatpush1.msra.mxu0 %v92
    %1313 = vmatprep.subr.mxu0 0.0
    %1314 = vmatpush1.msra.mxu0 %v91
    %1315 = vmatprep.subr.mxu0 0.0
    %1316 = vmatpush2.msra.mxu0 0.0
    %1317 = vmatprep.subr.mxu0 0.0
    %1318 = vmatpush2.msra.mxu0 0.0
    %1319 = vmatprep.subr.mxu0 0.0
    %1320 = vmatpush2.msra.mxu0 0.0
    %1321 = vmatprep.subr.mxu0 0.0
    %1322 = vmatpush2.msra.mxu0 0.0
    %1323 = vmatprep.subr.mxu0 0.0
    %1324 = vmatpush2.msra.mxu0 0.0
    %1325 = vmatprep.subr.mxu0 0.0
    %1326 = vmatpush2.msra.mxu0 0.0
    %1327 = vmatprep.subr.mxu0 0.0
    %1328 = vmatpush2.msra.mxu0 0.0
    %1329 = vmatprep.subr.mxu0 0.0
    %1330 = vmatpush2.msra.mxu0 0.0
    %1331 = vmatprep.subr.mxu0 0.0
    %1332 = vmatpush2.msra.mxu0 0.0
    %1333 = vmatprep.subr.mxu0 0.0
    %1334 = vmatpush2.msra.mxu0 0.0
    %1335 = vmatprep.subr.mxu0 0.0
    %1336 = vmatpush2.msra.mxu0 0.0
    %1337 = vmatprep.subr.mxu0 0.0
    %1338 = vmatpush2.msra.mxu0 0.0
    %1339 = vmatprep.subr.mxu0 0.0
    %1340 = vmatpush2.msra.mxu0 0.0
    %1341 = vmatprep.subr.mxu0 0.0
    %1342 = vmatpush2.msra.mxu0 0.0
    %1343 = vmatprep.subr.mxu0 0.0
    %1344 = vmatpush2.msra.mxu0 0.0
    %1345 = vmatprep.subr.mxu0 0.0
    %1346 = vmatpush2.msra.mxu0 0.0
    %1347 = vmatprep.mubr.f32.mxu0 0.0
    %1348 = vmatmul.mubr.f32.gmra.mxu0 %v1281
    %v1349 = vpop.f32.mrf.mxu0
    %v1350 = vadd.f32 0.0, %v1349
    %v1351 = vpop.f32.mrf.mxu0
    %1352 = vdwg.mxu0
    %v1353 = vsel %vm290, %v1350, 0.0
    %1354 = vadd.xlane.f32.xlu0 %v1353
    %v1355 = vpop.xlane.xlu0 %1354
    %v1356 = vmul.f32 %v1355, %v294
    %v1357 = vmul.f32 %v1350, %v1350
    %v1358 = vsel %vm290, %v1357, 0.0
    %1359 = vadd.xlane.f32.xlu0 %v1358
    %v1360 = vpop.xlane.xlu0 %1359
    %v1361 = vmul.f32 %v1360, %v294
    %v1362 = vmul.f32 %v1356, %v1356
    %v1363 = vsub.f32 %v1361, %v1362
    %v1364 = vmax.f32 %v1363, 0.0
    %v1365 = vsub.f32 %v1350, %v1356
    %v1366 = vadd.f32 %v1364, 1e-05
    %v1367 = vrsqrt.pop %v1366
    %v1368 = vmul.f32 %v1365, %v1367
    %v1369 = vmul.f32 %v1368, %v312
    %v1370 = vadd.f32 %v1369, %v319
    %v1371 = vmax.f32 %v1370, 0.0
    %v1373 = vsel %vm112, %v1371, 0
    %1375 = vmatprep.subr.mxu0 0.0
    %1376 = vmatpush1.msra.mxu0 0.0
    %1377 = vmatprep.subr.mxu0 0.0
    %1378 = vmatpush1.msra.mxu0 0.0
    %1379 = vmatprep.subr.mxu0 0.0
    %1380 = vmatpush1.msra.mxu0 0.0
    %1381 = vmatprep.subr.mxu0 0.0
    %1382 = vmatpush1.msra.mxu0 0.0
    %1383 = vmatprep.subr.mxu0 0.0
    %1384 = vmatpush1.msra.mxu0 0.0
    %1385 = vmatprep.subr.mxu0 0.0
    %1386 = vmatpush1.msra.mxu0 0.0
    %1387 = vmatprep.subr.mxu0 0.0
    %1388 = vmatpush1.msra.mxu0 0.0
    %1389 = vmatprep.subr.mxu0 0.0
    %1390 = vmatpush1.msra.mxu0 0.0
    %1391 = vmatprep.subr.mxu0 0.0
    %1392 = vmatpush1.msra.mxu0 0.0
    %1393 = vmatprep.subr.mxu0 0.0
    %1394 = vmatpush1.msra.mxu0 0.0
    %1395 = vmatprep.subr.mxu0 0.0
    %1396 = vmatpush1.msra.mxu0 0.0
    %1397 = vmatprep.subr.mxu0 0.0
    %1398 = vmatpush1.msra.mxu0 0.0
    %1399 = vmatprep.subr.mxu0 0.0
    %1400 = vmatpush1.msra.mxu0 %v100
    %1401 = vmatprep.subr.mxu0 0.0
    %1402 = vmatpush1.msra.mxu0 %v99
    %1403 = vmatprep.subr.mxu0 0.0
    %1404 = vmatpush1.msra.mxu0 %v98
    %1405 = vmatprep.subr.mxu0 0.0
    %1406 = vmatpush1.msra.mxu0 %v97
    %1407 = vmatprep.subr.mxu0 0.0
    %1408 = vmatpush2.msra.mxu0 0.0
    %1409 = vmatprep.subr.mxu0 0.0
    %1410 = vmatpush2.msra.mxu0 0.0
    %1411 = vmatprep.subr.mxu0 0.0
    %1412 = vmatpush2.msra.mxu0 0.0
    %1413 = vmatprep.subr.mxu0 0.0
    %1414 = vmatpush2.msra.mxu0 0.0
    %1415 = vmatprep.subr.mxu0 0.0
    %1416 = vmatpush2.msra.mxu0 0.0
    %1417 = vmatprep.subr.mxu0 0.0
    %1418 = vmatpush2.msra.mxu0 0.0
    %1419 = vmatprep.subr.mxu0 0.0
    %1420 = vmatpush2.msra.mxu0 0.0
    %1421 = vmatprep.subr.mxu0 0.0
    %1422 = vmatpush2.msra.mxu0 0.0
    %1423 = vmatprep.subr.mxu0 0.0
    %1424 = vmatpush2.msra.mxu0 0.0
    %1425 = vmatprep.subr.mxu0 0.0
    %1426 = vmatpush2.msra.mxu0 0.0
    %1427 = vmatprep.subr.mxu0 0.0
    %1428 = vmatpush2.msra.mxu0 0.0
    %1429 = vmatprep.subr.mxu0 0.0
    %1430 = vmatpush2.msra.mxu0 0.0
    %1431 = vmatprep.subr.mxu0 0.0
    %1432 = vmatpush2.msra.mxu0 0.0
    %1433 = vmatprep.subr.mxu0 0.0
    %1434 = vmatpush2.msra.mxu0 0.0
    %1435 = vmatprep.subr.mxu0 0.0
    %1436 = vmatpush2.msra.mxu0 0.0
    %1437 = vmatprep.subr.mxu0 0.0
    %1438 = vmatpush2.msra.mxu0 0.0
    %1439 = vmatprep.mubr.f32.mxu0 0.0
    %1440 = vmatmul.mubr.f32.gmra.mxu0 %v1373
    %v1441 = vpop.f32.mrf.mxu0
    %v1442 = vadd.f32 %v183, %v1441
    %v1443 = vpop.f32.mrf.mxu0
    %1444 = vdwg.mxu0
    %v1445 = vsel %vm290, %v1442, 0.0
    %1446 = vadd.xlane.f32.xlu0 %v1445
    %v1447 = vpop.xlane.xlu0 %1446
    %v1448 = vmul.f32 %v1447, %v294
    %v1449 = vmul.f32 %v1442, %v1442
    %v1450 = vsel %vm290, %v1449, 0.0
    %1451 = vadd.xlane.f32.xlu0 %v1450
    %v1452 = vpop.xlane.xlu0 %1451
    %v1453 = vmul.f32 %v1452, %v294
    %v1454 = vmul.f32 %v1448, %v1448
    %v1455 = vsub.f32 %v1453, %v1454
    %v1456 = vmax.f32 %v1455, 0.0
    %v1457 = vsub.f32 %v1442, %v1448
    %v1458 = vadd.f32 %v1456, 1e-05
    %v1459 = vrsqrt.pop %v1458
    %v1460 = vmul.f32 %v1457, %v1459
    %v1461 = vmul.f32 %v1460, %v416
    %v1462 = vadd.f32 %v1461, %v423
    %v1463 = vmax.f32 %v1462, 0.0
    %1464 = vrot.lane.b32.xlu0 %v105, 122
    %v1465 = vpop.permute.xlu0 %1464
    %v1467 = vsub.f32 %v103, %v1465
    %1468 = vrot.lane.b32.xlu0 %v106, 122
    %v1469 = vpop.permute.xlu0 %1468
    %v1471 = vsub.f32 %v104, %v1469
    %1473 = vset.pattern.permute.xlu0 0
    %1474 = vperm.xlu0 %1473, %v1467
    %v1475 = vpop.permute.xlu0 %1474
    %v1477 = vmul.f32 %v1475, %v196
    %1479 = vset.pattern.permute.xlu0 0
    %1480 = vperm.xlu0 %1479, %v1471
    %v1481 = vpop.permute.xlu0 %1480
    %v1483 = vmul.f32 %v1481, %v206
    %v1484 = vadd.f32 %v1477, %v1483
    %v1485 = vadd.f32 %v1484, %v213
    %v1486 = vmax.f32 %v1485, 0.0
    %v1488 = vsel %vm112, %v1486, 0
    %1490 = vmatprep.subr.mxu0 0.0
    %1491 = vmatpush1.msra.mxu0 0.0
    %1492 = vmatprep.subr.mxu0 0.0
    %1493 = vmatpush1.msra.mxu0 0.0
    %1494 = vmatprep.subr.mxu0 0.0
    %1495 = vmatpush1.msra.mxu0 0.0
    %1496 = vmatprep.subr.mxu0 0.0
    %1497 = vmatpush1.msra.mxu0 0.0
    %1498 = vmatprep.subr.mxu0 0.0
    %1499 = vmatpush1.msra.mxu0 0.0
    %1500 = vmatprep.subr.mxu0 0.0
    %1501 = vmatpush1.msra.mxu0 0.0
    %1502 = vmatprep.subr.mxu0 0.0
    %1503 = vmatpush1.msra.mxu0 0.0
    %1504 = vmatprep.subr.mxu0 0.0
    %1505 = vmatpush1.msra.mxu0 0.0
    %1506 = vmatprep.subr.mxu0 0.0
    %1507 = vmatpush1.msra.mxu0 0.0
    %1508 = vmatprep.subr.mxu0 0.0
    %1509 = vmatpush1.msra.mxu0 0.0
    %1510 = vmatprep.subr.mxu0 0.0
    %1511 = vmatpush1.msra.mxu0 0.0
    %1512 = vmatprep.subr.mxu0 0.0
    %1513 = vmatpush1.msra.mxu0 0.0
    %1514 = vmatprep.subr.mxu0 0.0
    %1515 = vmatpush1.msra.mxu0 %v94
    %1516 = vmatprep.subr.mxu0 0.0
    %1517 = vmatpush1.msra.mxu0 %v93
    %1518 = vmatprep.subr.mxu0 0.0
    %1519 = vmatpush1.msra.mxu0 %v92
    %1520 = vmatprep.subr.mxu0 0.0
    %1521 = vmatpush1.msra.mxu0 %v91
    %1522 = vmatprep.subr.mxu0 0.0
    %1523 = vmatpush2.msra.mxu0 0.0
    %1524 = vmatprep.subr.mxu0 0.0
    %1525 = vmatpush2.msra.mxu0 0.0
    %1526 = vmatprep.subr.mxu0 0.0
    %1527 = vmatpush2.msra.mxu0 0.0
    %1528 = vmatprep.subr.mxu0 0.0
    %1529 = vmatpush2.msra.mxu0 0.0
    %1530 = vmatprep.subr.mxu0 0.0
    %1531 = vmatpush2.msra.mxu0 0.0
    %1532 = vmatprep.subr.mxu0 0.0
    %1533 = vmatpush2.msra.mxu0 0.0
    %1534 = vmatprep.subr.mxu0 0.0
    %1535 = vmatpush2.msra.mxu0 0.0
    %1536 = vmatprep.subr.mxu0 0.0
    %1537 = vmatpush2.msra.mxu0 0.0
    %1538 = vmatprep.subr.mxu0 0.0
    %1539 = vmatpush2.msra.mxu0 0.0
    %1540 = vmatprep.subr.mxu0 0.0
    %1541 = vmatpush2.msra.mxu0 0.0
    %1542 = vmatprep.subr.mxu0 0.0
    %1543 = vmatpush2.msra.mxu0 0.0
    %1544 = vmatprep.subr.mxu0 0.0
    %1545 = vmatpush2.msra.mxu0 0.0
    %1546 = vmatprep.subr.mxu0 0.0
    %1547 = vmatpush2.msra.mxu0 0.0
    %1548 = vmatprep.subr.mxu0 0.0
    %1549 = vmatpush2.msra.mxu0 0.0
    %1550 = vmatprep.subr.mxu0 0.0
    %1551 = vmatpush2.msra.mxu0 0.0
    %1552 = vmatprep.subr.mxu0 0.0
    %1553 = vmatpush2.msra.mxu0 0.0
    %1554 = vmatprep.mubr.f32.mxu0 0.0
    %1555 = vmatmul.mubr.f32.gmra.mxu0 %v1488
    %v1556 = vpop.f32.mrf.mxu0
    %v1557 = vadd.f32 0.0, %v1556
    %v1558 = vpop.f32.mrf.mxu0
    %1559 = vdwg.mxu0
    %v1560 = vsel %vm290, %v1557, 0.0
    %1561 = vadd.xlane.f32.xlu0 %v1560
    %v1562 = vpop.xlane.xlu0 %1561
    %v1563 = vmul.f32 %v1562, %v294
    %v1564 = vmul.f32 %v1557, %v1557
    %v1565 = vsel %vm290, %v1564, 0.0
    %1566 = vadd.xlane.f32.xlu0 %v1565
    %v1567 = vpop.xlane.xlu0 %1566
    %v1568 = vmul.f32 %v1567, %v294
    %v1569 = vmul.f32 %v1563, %v1563
    %v1570 = vsub.f32 %v1568, %v1569
    %v1571 = vmax.f32 %v1570, 0.0
    %v1572 = vsub.f32 %v1557, %v1563
    %v1573 = vadd.f32 %v1571, 1e-05
    %v1574 = vrsqrt.pop %v1573
    %v1575 = vmul.f32 %v1572, %v1574
    %v1576 = vmul.f32 %v1575, %v312
    %v1577 = vadd.f32 %v1576, %v319
    %v1578 = vmax.f32 %v1577, 0.0
    %v1580 = vsel %vm112, %v1578, 0
    %1582 = vmatprep.subr.mxu0 0.0
    %1583 = vmatpush1.msra.mxu0 0.0
    %1584 = vmatprep.subr.mxu0 0.0
    %1585 = vmatpush1.msra.mxu0 0.0
    %1586 = vmatprep.subr.mxu0 0.0
    %1587 = vmatpush1.msra.mxu0 0.0
    %1588 = vmatprep.subr.mxu0 0.0
    %1589 = vmatpush1.msra.mxu0 0.0
    %1590 = vmatprep.subr.mxu0 0.0
    %1591 = vmatpush1.msra.mxu0 0.0
    %1592 = vmatprep.subr.mxu0 0.0
    %1593 = vmatpush1.msra.mxu0 0.0
    %1594 = vmatprep.subr.mxu0 0.0
    %1595 = vmatpush1.msra.mxu0 0.0
    %1596 = vmatprep.subr.mxu0 0.0
    %1597 = vmatpush1.msra.mxu0 0.0
    %1598 = vmatprep.subr.mxu0 0.0
    %1599 = vmatpush1.msra.mxu0 0.0
    %1600 = vmatprep.subr.mxu0 0.0
    %1601 = vmatpush1.msra.mxu0 0.0
    %1602 = vmatprep.subr.mxu0 0.0
    %1603 = vmatpush1.msra.mxu0 0.0
    %1604 = vmatprep.subr.mxu0 0.0
    %1605 = vmatpush1.msra.mxu0 0.0
    %1606 = vmatprep.subr.mxu0 0.0
    %1607 = vmatpush1.msra.mxu0 %v100
    %1608 = vmatprep.subr.mxu0 0.0
    %1609 = vmatpush1.msra.mxu0 %v99
    %1610 = vmatprep.subr.mxu0 0.0
    %1611 = vmatpush1.msra.mxu0 %v98
    %1612 = vmatprep.subr.mxu0 0.0
    %1613 = vmatpush1.msra.mxu0 %v97
    %1614 = vmatprep.subr.mxu0 0.0
    %1615 = vmatpush2.msra.mxu0 0.0
    %1616 = vmatprep.subr.mxu0 0.0
    %1617 = vmatpush2.msra.mxu0 0.0
    %1618 = vmatprep.subr.mxu0 0.0
    %1619 = vmatpush2.msra.mxu0 0.0
    %1620 = vmatprep.subr.mxu0 0.0
    %1621 = vmatpush2.msra.mxu0 0.0
    %1622 = vmatprep.subr.mxu0 0.0
    %1623 = vmatpush2.msra.mxu0 0.0
    %1624 = vmatprep.subr.mxu0 0.0
    %1625 = vmatpush2.msra.mxu0 0.0
    %1626 = vmatprep.subr.mxu0 0.0
    %1627 = vmatpush2.msra.mxu0 0.0
    %1628 = vmatprep.subr.mxu0 0.0
    %1629 = vmatpush2.msra.mxu0 0.0
    %1630 = vmatprep.subr.mxu0 0.0
    %1631 = vmatpush2.msra.mxu0 0.0
    %1632 = vmatprep.subr.mxu0 0.0
    %1633 = vmatpush2.msra.mxu0 0.0
    %1634 = vmatprep.subr.mxu0 0.0
    %1635 = vmatpush2.msra.mxu0 0.0
    %1636 = vmatprep.subr.mxu0 0.0
    %1637 = vmatpush2.msra.mxu0 0.0
    %1638 = vmatprep.subr.mxu0 0.0
    %1639 = vmatpush2.msra.mxu0 0.0
    %1640 = vmatprep.subr.mxu0 0.0
    %1641 = vmatpush2.msra.mxu0 0.0
    %1642 = vmatprep.subr.mxu0 0.0
    %1643 = vmatpush2.msra.mxu0 0.0
    %1644 = vmatprep.subr.mxu0 0.0
    %1645 = vmatpush2.msra.mxu0 0.0
    %1646 = vmatprep.mubr.f32.mxu0 0.0
    %1647 = vmatmul.mubr.f32.gmra.mxu0 %v1580
    %v1648 = vpop.f32.mrf.mxu0
    %v1649 = vadd.f32 %v183, %v1648
    %v1650 = vpop.f32.mrf.mxu0
    %1651 = vdwg.mxu0
    %v1652 = vsel %vm290, %v1649, 0.0
    %1653 = vadd.xlane.f32.xlu0 %v1652
    %v1654 = vpop.xlane.xlu0 %1653
    %v1655 = vmul.f32 %v1654, %v294
    %v1656 = vmul.f32 %v1649, %v1649
    %v1657 = vsel %vm290, %v1656, 0.0
    %1658 = vadd.xlane.f32.xlu0 %v1657
    %v1659 = vpop.xlane.xlu0 %1658
    %v1660 = vmul.f32 %v1659, %v294
    %v1661 = vmul.f32 %v1655, %v1655
    %v1662 = vsub.f32 %v1660, %v1661
    %v1663 = vmax.f32 %v1662, 0.0
    %v1664 = vsub.f32 %v1649, %v1655
    %v1665 = vadd.f32 %v1663, 1e-05
    %v1666 = vrsqrt.pop %v1665
    %v1667 = vmul.f32 %v1664, %v1666
    %v1668 = vmul.f32 %v1667, %v416
    %v1669 = vadd.f32 %v1668, %v423
    %v1670 = vmax.f32 %v1669, 0.0
    %1671 = vrot.lane.b32.xlu0 %v105, 121
    %v1672 = vpop.permute.xlu0 %1671
    %v1674 = vsub.f32 %v103, %v1672
    %1675 = vrot.lane.b32.xlu0 %v106, 121
    %v1676 = vpop.permute.xlu0 %1675
    %v1678 = vsub.f32 %v104, %v1676
    %1680 = vset.pattern.permute.xlu0 0
    %1681 = vperm.xlu0 %1680, %v1674
    %v1682 = vpop.permute.xlu0 %1681
    %v1684 = vmul.f32 %v1682, %v196
    %1686 = vset.pattern.permute.xlu0 0
    %1687 = vperm.xlu0 %1686, %v1678
    %v1688 = vpop.permute.xlu0 %1687
    %v1690 = vmul.f32 %v1688, %v206
    %v1691 = vadd.f32 %v1684, %v1690
    %v1692 = vadd.f32 %v1691, %v213
    %v1693 = vmax.f32 %v1692, 0.0
    %v1695 = vsel %vm112, %v1693, 0
    %1697 = vmatprep.subr.mxu0 0.0
    %1698 = vmatpush1.msra.mxu0 0.0
    %1699 = vmatprep.subr.mxu0 0.0
    %1700 = vmatpush1.msra.mxu0 0.0
    %1701 = vmatprep.subr.mxu0 0.0
    %1702 = vmatpush1.msra.mxu0 0.0
    %1703 = vmatprep.subr.mxu0 0.0
    %1704 = vmatpush1.msra.mxu0 0.0
    %1705 = vmatprep.subr.mxu0 0.0
    %1706 = vmatpush1.msra.mxu0 0.0
    %1707 = vmatprep.subr.mxu0 0.0
    %1708 = vmatpush1.msra.mxu0 0.0
    %1709 = vmatprep.subr.mxu0 0.0
    %1710 = vmatpush1.msra.mxu0 0.0
    %1711 = vmatprep.subr.mxu0 0.0
    %1712 = vmatpush1.msra.mxu0 0.0
    %1713 = vmatprep.subr.mxu0 0.0
    %1714 = vmatpush1.msra.mxu0 0.0
    %1715 = vmatprep.subr.mxu0 0.0
    %1716 = vmatpush1.msra.mxu0 0.0
    %1717 = vmatprep.subr.mxu0 0.0
    %1718 = vmatpush1.msra.mxu0 0.0
    %1719 = vmatprep.subr.mxu0 0.0
    %1720 = vmatpush1.msra.mxu0 0.0
    %1721 = vmatprep.subr.mxu0 0.0
    %1722 = vmatpush1.msra.mxu0 %v94
    %1723 = vmatprep.subr.mxu0 0.0
    %1724 = vmatpush1.msra.mxu0 %v93
    %1725 = vmatprep.subr.mxu0 0.0
    %1726 = vmatpush1.msra.mxu0 %v92
    %1727 = vmatprep.subr.mxu0 0.0
    %1728 = vmatpush1.msra.mxu0 %v91
    %1729 = vmatprep.subr.mxu0 0.0
    %1730 = vmatpush2.msra.mxu0 0.0
    %1731 = vmatprep.subr.mxu0 0.0
    %1732 = vmatpush2.msra.mxu0 0.0
    %1733 = vmatprep.subr.mxu0 0.0
    %1734 = vmatpush2.msra.mxu0 0.0
    %1735 = vmatprep.subr.mxu0 0.0
    %1736 = vmatpush2.msra.mxu0 0.0
    %1737 = vmatprep.subr.mxu0 0.0
    %1738 = vmatpush2.msra.mxu0 0.0
    %1739 = vmatprep.subr.mxu0 0.0
    %1740 = vmatpush2.msra.mxu0 0.0
    %1741 = vmatprep.subr.mxu0 0.0
    %1742 = vmatpush2.msra.mxu0 0.0
    %1743 = vmatprep.subr.mxu0 0.0
    %1744 = vmatpush2.msra.mxu0 0.0
    %1745 = vmatprep.subr.mxu0 0.0
    %1746 = vmatpush2.msra.mxu0 0.0
    %1747 = vmatprep.subr.mxu0 0.0
    %1748 = vmatpush2.msra.mxu0 0.0
    %1749 = vmatprep.subr.mxu0 0.0
    %1750 = vmatpush2.msra.mxu0 0.0
    %1751 = vmatprep.subr.mxu0 0.0
    %1752 = vmatpush2.msra.mxu0 0.0
    %1753 = vmatprep.subr.mxu0 0.0
    %1754 = vmatpush2.msra.mxu0 0.0
    %1755 = vmatprep.subr.mxu0 0.0
    %1756 = vmatpush2.msra.mxu0 0.0
    %1757 = vmatprep.subr.mxu0 0.0
    %1758 = vmatpush2.msra.mxu0 0.0
    %1759 = vmatprep.subr.mxu0 0.0
    %1760 = vmatpush2.msra.mxu0 0.0
    %1761 = vmatprep.mubr.f32.mxu0 0.0
    %1762 = vmatmul.mubr.f32.gmra.mxu0 %v1695
    %v1763 = vpop.f32.mrf.mxu0
    %v1764 = vadd.f32 0.0, %v1763
    %v1765 = vpop.f32.mrf.mxu0
    %1766 = vdwg.mxu0
    %v1767 = vsel %vm290, %v1764, 0.0
    %1768 = vadd.xlane.f32.xlu0 %v1767
    %v1769 = vpop.xlane.xlu0 %1768
    %v1770 = vmul.f32 %v1769, %v294
    %v1771 = vmul.f32 %v1764, %v1764
    %v1772 = vsel %vm290, %v1771, 0.0
    %1773 = vadd.xlane.f32.xlu0 %v1772
    %v1774 = vpop.xlane.xlu0 %1773
    %v1775 = vmul.f32 %v1774, %v294
    %v1776 = vmul.f32 %v1770, %v1770
    %v1777 = vsub.f32 %v1775, %v1776
    %v1778 = vmax.f32 %v1777, 0.0
    %v1779 = vsub.f32 %v1764, %v1770
    %v1780 = vadd.f32 %v1778, 1e-05
    %v1781 = vrsqrt.pop %v1780
    %v1782 = vmul.f32 %v1779, %v1781
    %v1783 = vmul.f32 %v1782, %v312
    %v1784 = vadd.f32 %v1783, %v319
    %v1785 = vmax.f32 %v1784, 0.0
    %v1787 = vsel %vm112, %v1785, 0
    %1789 = vmatprep.subr.mxu0 0.0
    %1790 = vmatpush1.msra.mxu0 0.0
    %1791 = vmatprep.subr.mxu0 0.0
    %1792 = vmatpush1.msra.mxu0 0.0
    %1793 = vmatprep.subr.mxu0 0.0
    %1794 = vmatpush1.msra.mxu0 0.0
    %1795 = vmatprep.subr.mxu0 0.0
    %1796 = vmatpush1.msra.mxu0 0.0
    %1797 = vmatprep.subr.mxu0 0.0
    %1798 = vmatpush1.msra.mxu0 0.0
    %1799 = vmatprep.subr.mxu0 0.0
    %1800 = vmatpush1.msra.mxu0 0.0
    %1801 = vmatprep.subr.mxu0 0.0
    %1802 = vmatpush1.msra.mxu0 0.0
    %1803 = vmatprep.subr.mxu0 0.0
    %1804 = vmatpush1.msra.mxu0 0.0
    %1805 = vmatprep.subr.mxu0 0.0
    %1806 = vmatpush1.msra.mxu0 0.0
    %1807 = vmatprep.subr.mxu0 0.0
    %1808 = vmatpush1.msra.mxu0 0.0
    %1809 = vmatprep.subr.mxu0 0.0
    %1810 = vmatpush1.msra.mxu0 0.0
    %1811 = vmatprep.subr.mxu0 0.0
    %1812 = vmatpush1.msra.mxu0 0.0
    %1813 = vmatprep.subr.mxu0 0.0
    %1814 = vmatpush1.msra.mxu0 %v100
    %1815 = vmatprep.subr.mxu0 0.0
    %1816 = vmatpush1.msra.mxu0 %v99
    %1817 = vmatprep.subr.mxu0 0.0
    %1818 = vmatpush1.msra.mxu0 %v98
    %1819 = vmatprep.subr.mxu0 0.0
    %1820 = vmatpush1.msra.mxu0 %v97
    %1821 = vmatprep.subr.mxu0 0.0
    %1822 = vmatpush2.msra.mxu0 0.0
    %1823 = vmatprep.subr.mxu0 0.0
    %1824 = vmatpush2.msra.mxu0 0.0
    %1825 = vmatprep.subr.mxu0 0.0
    %1826 = vmatpush2.msra.mxu0 0.0
    %1827 = vmatprep.subr.mxu0 0.0
    %1828 = vmatpush2.msra.mxu0 0.0
    %1829 = vmatprep.subr.mxu0 0.0
    %1830 = vmatpush2.msra.mxu0 0.0
    %1831 = vmatprep.subr.mxu0 0.0
    %1832 = vmatpush2.msra.mxu0 0.0
    %1833 = vmatprep.subr.mxu0 0.0
    %1834 = vmatpush2.msra.mxu0 0.0
    %1835 = vmatprep.subr.mxu0 0.0
    %1836 = vmatpush2.msra.mxu0 0.0
    %1837 = vmatprep.subr.mxu0 0.0
    %1838 = vmatpush2.msra.mxu0 0.0
    %1839 = vmatprep.subr.mxu0 0.0
    %1840 = vmatpush2.msra.mxu0 0.0
    %1841 = vmatprep.subr.mxu0 0.0
    %1842 = vmatpush2.msra.mxu0 0.0
    %1843 = vmatprep.subr.mxu0 0.0
    %1844 = vmatpush2.msra.mxu0 0.0
    %1845 = vmatprep.subr.mxu0 0.0
    %1846 = vmatpush2.msra.mxu0 0.0
    %1847 = vmatprep.subr.mxu0 0.0
    %1848 = vmatpush2.msra.mxu0 0.0
    %1849 = vmatprep.subr.mxu0 0.0
    %1850 = vmatpush2.msra.mxu0 0.0
    %1851 = vmatprep.subr.mxu0 0.0
    %1852 = vmatpush2.msra.mxu0 0.0
    %1853 = vmatprep.mubr.f32.mxu0 0.0
    %1854 = vmatmul.mubr.f32.gmra.mxu0 %v1787
    %v1855 = vpop.f32.mrf.mxu0
    %v1856 = vadd.f32 %v183, %v1855
    %v1857 = vpop.f32.mrf.mxu0
    %1858 = vdwg.mxu0
    %v1859 = vsel %vm290, %v1856, 0.0
    %1860 = vadd.xlane.f32.xlu0 %v1859
    %v1861 = vpop.xlane.xlu0 %1860
    %v1862 = vmul.f32 %v1861, %v294
    %v1863 = vmul.f32 %v1856, %v1856
    %v1864 = vsel %vm290, %v1863, 0.0
    %1865 = vadd.xlane.f32.xlu0 %v1864
    %v1866 = vpop.xlane.xlu0 %1865
    %v1867 = vmul.f32 %v1866, %v294
    %v1868 = vmul.f32 %v1862, %v1862
    %v1869 = vsub.f32 %v1867, %v1868
    %v1870 = vmax.f32 %v1869, 0.0
    %v1871 = vsub.f32 %v1856, %v1862
    %v1872 = vadd.f32 %v1870, 1e-05
    %v1873 = vrsqrt.pop %v1872
    %v1874 = vmul.f32 %v1871, %v1873
    %v1875 = vmul.f32 %v1874, %v416
    %v1876 = vadd.f32 %v1875, %v423
    %v1877 = vmax.f32 %v1876, 0.0
    %1879 = vrot.lane.b32.xlu0 %v635, 32
    %v1880 = vpop.permute.xlu0 %1879
    %1883 = vrot.lane.b32.xlu0 %v842, 64
    %v1884 = vpop.permute.xlu0 %1883
    %1887 = vrot.lane.b32.xlu0 %v1049, 96
    %v1888 = vpop.permute.xlu0 %1887
    %1891 = vrot.lane.b32.xlu0 %v1463, 32
    %v1892 = vpop.permute.xlu0 %1891
    %1895 = vrot.lane.b32.xlu0 %v1670, 64
    %v1896 = vpop.permute.xlu0 %1895
    %1899 = vrot.lane.b32.xlu0 %v1877, 96
    %v1900 = vpop.permute.xlu0 %1899
    %v1902 = vsel %vm112, %v426, %v1880
    %vm1903 = vcmask 523264
    %v1904 = vsel %vm1903, %v1902, %v1884
    %vm1905 = vcmask 785408
    %v1906 = vsel %vm1905, %v1904, %v1888
    %v1907 = vsel %vm112, %v1256, %v1892
    %v1908 = vsel %vm1903, %v1907, %v1896
    %v1909 = vsel %vm1905, %v1908, %v1900
    %v1912 = vcombine.low %v1906, %v1909
    %1914 = vst [vmem:[#allocation8] sm:$0xff] %v1912
    // Predicated region
    $region70: #{tpu_custom_call.1} parent=1 // pred_check
      _
    $region71: #{tpu_custom_call.1} parent=1 // pred_check_branch
      %1916 = sbr.rel (0) target = $region73
    $region72: #{tpu_custom_call.1} parent=1 // pred_region
      %s1918 = ssub.s32 128, 128
      %1919 = vsyncadd [#allocation4], %s1918
      %s1921 = sshll.u32 [#allocation8], 4
      %s1922 = int_to_ptr.vmem [resolvable:$true] %s1921
      %1924 = dma.vmem_to_hbm [thread:$0]  %s1922, 128, %s14, [#allocation4]
    $region73: #{tpu_custom_call.1} parent=1 // pred_fallthru
      _
    // Predicated region
    $region74: #{tpu_custom_call.1} parent=1 // pred_check
      _
    $region75: #{tpu_custom_call.1} parent=1 // pred_check_branch
      %1926 = sbr.rel (0) target = $region77
    $region76: #{tpu_custom_call.1} parent=1 // pred_region
      %1927 = dma.done [#allocation4], 128
    $region77: #{tpu_custom_call.1} parent=1 // pred_fallthru
      _
    %1928 = vsyncpa [#allocation3], 1
    %1929 = vsyncpa [#allocation6], 1
    %1930 = vsyncpa [#allocation4], 1

</llo_original>
